<compile_context>
chip_gen: v6e
topology: v6e:2x2x1
jax: 0.10.0
libtpu: 0.0.40
codegen_flags: <defaults>
</compile_context>

<pallas_src>
import functools
import math

import jax
import jax.numpy as jnp
from jax import lax
from jax.experimental import pallas as pl
from jax.experimental.pallas import tpu as pltpu

_EPS = 1e-6
_CHUNK = 16          # sublane rows per inner chunk (aligned for f32 and bf16 tiles)


def _approx_recip(x):
    return pl.reciprocal(x, approx=True)


def _atan_pos_ratio(w, h):
    # TODO(synk): torch.atan has no direct Mosaic lowering; Cephes-style f32
    # polynomial for arctan(|w| / max(|h|, 1e-6)) (VPU/EUP only, ~1e-6 abs err).
    aw = jnp.abs(w)
    ah = jnp.maximum(jnp.abs(h), 1e-6)
    mn = jnp.minimum(aw, ah)
    mx = jnp.maximum(aw, ah)
    tan_pi_8 = 0.41421356237309503
    big = mn > tan_pi_8 * mx
    num = jnp.where(big, mn - mx, mn)
    den = jnp.where(big, mn + mx, mx)          # den >= 1e-6
    x = num * _approx_recip(den)               # |x| <= tan(pi/8)
    z = x * x
    poly = (((8.05374449538e-2 * z - 1.38776856032e-1) * z
             + 1.99777106478e-1) * z - 3.33329491539e-1) * z * x + x
    at = poly + jnp.where(big, math.pi / 4.0, 0.0)
    return jnp.where(aw > ah, math.pi / 2.0 - at, at)


def _loss_layer_kernel(inv_img2, iou_thr, nc, n_gt, num_sub,
                       pxy_ref, pcc_ref, lxy_ref, lrest_ref, bb_ref, out_ref):
    b = pl.program_id(0)
    m = pl.program_id(1)

    @pl.when(m == 0)
    def _init():
        out_ref[...] = jnp.zeros_like(out_ref)

    f32 = jnp.float32

    # Per-batch GT box scalars (x1, y1, x2, y2, area + eps), read once per grid
    # step from SMEM (hoisted out of the sublane-chunk loop).
    base = b * (n_gt * 5)
    gt_boxes = []
    for n in range(n_gt):
        off = base + n * 5
        gt_boxes.append((bb_ref[off + 0], bb_ref[off + 1],
                         bb_ref[off + 2], bb_ref[off + 3], bb_ref[off + 4]))

    def chunk_body(i, carry):
        r0 = pl.multiple_of(i * _CHUNK, _CHUNK)
        sl = pl.ds(r0, _CHUNK)

        px = pxy_ref[0, sl, :].astype(f32)
        py = pxy_ref[1, sl, :].astype(f32)
        pw = pxy_ref[2, sl, :].astype(f32)
        ph = pxy_ref[3, sl, :].astype(f32)
        lx = lxy_ref[0, sl, :].astype(f32)
        ly = lxy_ref[1, sl, :].astype(f32)
        lw = lxy_ref[2, sl, :].astype(f32)
        lh = lxy_ref[3, sl, :].astype(f32)
        lobj = lrest_ref[0, sl, :].astype(f32)
        lmix = lrest_ref[1, sl, :].astype(f32)

        # ---------------- CIoU(pred_xywh, label_xywh) ----------------
        hpw = pw * 0.5
        hph = ph * 0.5
        p_x1 = px - hpw
        p_x2 = px + hpw
        p_y1 = py - hph
        p_y2 = py + hph
        p_x1, p_x2 = jnp.minimum(p_x1, p_x2), jnp.maximum(p_x1, p_x2)
        p_y1, p_y2 = jnp.minimum(p_y1, p_y2), jnp.maximum(p_y1, p_y2)

        hlw = lw * 0.5
        hlh = lh * 0.5
        l_x1 = lx - hlw
        l_x2 = lx + hlw
        l_y1 = ly - hlh
        l_y2 = ly + hlh
        l_x1, l_x2 = jnp.minimum(l_x1, l_x2), jnp.maximum(l_x1, l_x2)
        l_y1, l_y2 = jnp.minimum(l_y1, l_y2), jnp.maximum(l_y1, l_y2)

        area_p = (p_x2 - p_x1) * (p_y2 - p_y1)
        area_l = (l_x2 - l_x1) * (l_y2 - l_y1)
        inter = (jnp.maximum(jnp.minimum(p_x2, l_x2) - jnp.maximum(p_x1, l_x1), 0.0) *
                 jnp.maximum(jnp.minimum(p_y2, l_y2) - jnp.maximum(p_y1, l_y1), 0.0))
        union = area_p + area_l - inter
        ious = inter * _approx_recip(union + _EPS)

        o_w = jnp.maximum(p_x2, l_x2) - jnp.minimum(p_x1, l_x1)
        o_h = jnp.maximum(p_y2, l_y2) - jnp.minimum(p_y1, l_y1)
        outer_diag = o_w * o_w + o_h * o_h
        center_dis = (px - lx) * (px - lx) + (py - ly) * (py - ly)

        d_atan = _atan_pos_ratio(lw, lh) - _atan_pos_ratio(pw, ph)
        v = (4.0 / (math.pi ** 2)) * d_atan * d_atan
        alpha = v * _approx_recip(1.0 - ious + v + _EPS)
        cious = ious - (center_dis * _approx_recip(outer_diag + _EPS) + alpha * v)

        w_mask = lobj * lmix
        bbox_loss_scale = 2.0 - lw * lh * inv_img2
        loss_iou_elem = w_mask * bbox_loss_scale * (1.0 - cious)
        out_ref[0:_CHUNK, :] = out_ref[0:_CHUNK, :] + loss_iou_elem

        # ------- IoU(pred box, each GT box) -> running max over GT -------
        # Decode guarantees pred w/h >= 0, so the swapped corners equal the
        # unswapped ones and are reused here; GT area already carries +eps.
        area_pred = pw * ph
        iou_max = jnp.zeros_like(px)
        for (bx1, by1, bx2, by2, barea_eps) in gt_boxes:
            iw = jnp.maximum(jnp.minimum(p_x2, bx2) - jnp.maximum(p_x1, bx1), 0.0)
            ih = jnp.maximum(jnp.minimum(p_y2, by2) - jnp.maximum(p_y1, by1), 0.0)
            inter2 = iw * ih
            iou_n = inter2 * _approx_recip(area_pred + barea_eps - inter2)
            iou_max = jnp.maximum(iou_max, iou_n)
        noobj = (1.0 - lobj) * (iou_max < iou_thr).astype(f32)

        # ---------------- Focal conf loss (gamma=2, alpha=1) ----------------
        x = pcc_ref[0, sl, :].astype(f32)
        t = lobj
        e = jnp.exp(-jnp.abs(x))
        bce_conf = jnp.maximum(x, 0.0) - x * t + jnp.log1p(e)
        inv_1pe = _approx_recip(1.0 + e)
        sig = jnp.where(x >= 0.0, inv_1pe, e * inv_1pe)   # sigmoid(x), reusing e
        d = t - sig
        loss_conf_elem = (lobj + noobj) * (bce_conf * (d * d)) * lmix
        out_ref[_CHUNK:2 * _CHUNK, :] = out_ref[_CHUNK:2 * _CHUNK, :] + loss_conf_elem

        # ---------------- BCE cls loss (channel-chunked) ----------------
        def _bce(xc, tc):
            return jnp.maximum(xc, 0.0) - xc * tc + jnp.log1p(jnp.exp(-jnp.abs(xc)))

        if nc <= 32:
            cls_sum = jnp.zeros_like(px)
            for c in range(nc):
                xc = pcc_ref[1 + c, sl, :].astype(f32)
                tc = lrest_ref[2 + c, sl, :].astype(f32)
                cls_sum = cls_sum + _bce(xc, tc)
        else:
            def cls_body(c, acc):
                xc = pcc_ref[1 + c, sl, :].astype(f32)
                tc = lrest_ref[2 + c, sl, :].astype(f32)
                return acc + _bce(xc, tc)
            cls_sum = lax.fori_loop(0, nc, cls_body, jnp.zeros_like(px))

        out_ref[2 * _CHUNK:3 * _CHUNK, :] = (out_ref[2 * _CHUNK:3 * _CHUNK, :]
                                             + w_mask * cls_sum)
        return carry

    lax.fori_loop(0, num_sub, chunk_body, 0)


def _cal_loss_per_layer(p, p_d, label, bboxes, stride, iou_thr=0.5):
    B, G = p.shape[0], p.shape[1]
    A = p.shape[3]
    NC = p.shape[4] - 5
    M = G * G * A
    N = bboxes.shape[1]
    img_size = G * stride
    inv_img2 = 1.0 / float(img_size) ** 2

    # ---- tile sizing: lane-dense (TR, 128) tiles, TR multiple of _CHUNK ----
    R = (M + 127) // 128
    cbytes = (4 + 4) * 4 + ((1 + NC) + (2 + NC)) * 2   # bytes per M-element, all planes
    tr_cap = 64
    while tr_cap > _CHUNK and 2 * tr_cap * 128 * cbytes > 10 * 1024 * 1024:
        tr_cap -= _CHUNK                                # stay under all default VMEM limits
    num_m0 = -(-R // tr_cap)
    TR = min(tr_cap, ((-(-R // num_m0) + _CHUNK - 1) // _CHUNK) * _CHUNK)
    num_m = -(-R // TR)
    Rpad = num_m * TR
    Mpad = Rpad * 128

    def to_planes(x):
        # x: [B, M, C] (already in transport dtype) -> [B, C, Rpad, 128]
        C = x.shape[-1]
        x = jnp.transpose(x, (0, 2, 1))
        if Mpad != M:
            x = jnp.pad(x, ((0, 0), (0, 0), (0, Mpad - M)))
        return x.reshape(B, C, Rpad, 128)

    bf16 = jnp.bfloat16
    # Coordinates stay in the caller's dtype (f32) for IoU precision; conf/cls
    # logits and obj/mix/cls labels are downcast to bf16 BEFORE the layout pass.
    pxy_plane = to_planes(p_d[..., 0:4].reshape(B, M, 4))
    pcc_plane = to_planes(p[..., 4:].reshape(B, M, 1 + NC).astype(bf16))
    lxy_plane = to_planes(label[..., 0:4].reshape(B, M, 4))
    lrest_plane = to_planes(label[..., 4:].reshape(B, M, 2 + NC).astype(bf16))

    # Per-GT scalar table (x1, y1, x2, y2, area + eps), flat in SMEM.
    bb = bboxes.astype(jnp.float32)
    bx, by, bw, bh = bb[..., 0], bb[..., 1], bb[..., 2], bb[..., 3]
    bb_tab = jnp.stack([bx - bw * 0.5, by - bh * 0.5,
                        bx + bw * 0.5, by + bh * 0.5, bw * bh + _EPS], axis=-1)
    bb_flat = bb_tab.reshape(B * N * 5)

    kernel = functools.partial(_loss_layer_kernel, inv_img2, float(iou_thr),
                               NC, N, TR // _CHUNK)

    out = pl.pallas_call(
        kernel,
        out_shape=jax.ShapeDtypeStruct((B, 3 * _CHUNK, 128), jnp.float32),
        grid=(B, num_m),
        in_specs=[
            pl.BlockSpec((None, 4, TR, 128), lambda b, m: (b, 0, m, 0)),
            pl.BlockSpec((None, 1 + NC, TR, 128), lambda b, m: (b, 0, m, 0)),
            pl.BlockSpec((None, 4, TR, 128), lambda b, m: (b, 0, m, 0)),
            pl.BlockSpec((None, 2 + NC, TR, 128), lambda b, m: (b, 0, m, 0)),
            pl.BlockSpec(memory_space=pltpu.MemorySpace.SMEM),
        ],
        out_specs=pl.BlockSpec((None, 3 * _CHUNK, 128), lambda b, m: (b, 0, 0)),
        compiler_params=pltpu.CompilerParams(
            dimension_semantics=("parallel", "arbitrary")),
    )(pxy_plane, pcc_plane, lxy_plane, lrest_plane, bb_flat)

    # Final scalar reductions happen on a tiny (B, 3, 16*128) array in the wrapper.
    sums = jnp.sum(out.reshape(B, 3, _CHUNK * 128), axis=(0, 2)) / B
    loss_iou, loss_conf, loss_cls = sums[0], sums[1], sums[2]
    loss = loss_iou + loss_conf + loss_cls
    return loss, loss_iou, loss_conf, loss_cls


def loss_yolov3(p, p_d, label_s, label_m, label_l,
                bboxes_s, bboxes_m, bboxes_l,
                strides=(8, 16, 32), iou_threshold_loss=0.5):
    ls = _cal_loss_per_layer(p[0], p_d[0], label_s, bboxes_s, strides[0], iou_threshold_loss)
    lm = _cal_loss_per_layer(p[1], p_d[1], label_m, bboxes_m, strides[1], iou_threshold_loss)
    ll = _cal_loss_per_layer(p[2], p_d[2], label_l, bboxes_l, strides[2], iou_threshold_loss)
    loss = ll[0] + lm[0] + ls[0]
    loss_iou = ls[1] + lm[1] + ll[1]
    loss_conf = ls[2] + lm[2] + ll[2]
    loss_cls = ls[3] + lm[3] + ll[3]
    return loss, loss_iou, loss_conf, loss_cls


def _make_layer_data(key, B, G, A, NC, N, img_size):
    k = jax.random.split(key, 8)
    C = 5 + NC
    p = jax.random.normal(k[0], (B, G, G, A, C), jnp.float32)
    xy = jax.random.uniform(k[1], (B, G, G, A, 2), jnp.float32, 0.0, img_size)
    wh = jax.random.uniform(k[2], (B, G, G, A, 2), jnp.float32, 2.0, img_size * 0.5)
    rest = jax.random.normal(k[3], (B, G, G, A, C - 4), jnp.float32)
    p_d = jnp.concatenate([xy, wh, rest], axis=-1)

    lab_xy = jax.random.uniform(k[4], (B, G, G, A, 2), jnp.float32, 0.0, img_size)
    lab_wh = jax.random.uniform(k[4], (B, G, G, A, 2), jnp.float32, 2.0, img_size * 0.5)
    obj = (jax.random.uniform(k[5], (B, G, G, A, 1)) < 0.3).astype(jnp.float32)
    mix = jnp.ones((B, G, G, A, 1), jnp.float32)
    cls = (jax.random.uniform(k[6], (B, G, G, A, NC)) < 0.2).astype(jnp.float32)
    label = jnp.concatenate([lab_xy, lab_wh, obj, mix, cls], axis=-1)

    bb_xy = jax.random.uniform(k[7], (B, N, 2), jnp.float32, 0.0, img_size)
    bb_wh = jax.random.uniform(k[7], (B, N, 2), jnp.float32, 2.0, img_size * 0.5)
    bboxes = jnp.concatenate([bb_xy, bb_wh], axis=-1)
    return p, p_d, label, bboxes


if __name__ == "__main__":
    strides = (8, 16, 32)
    img_size = 64
    B, A, NC, N = 2, 3, 4, 8

    key = jax.random.PRNGKey(0)
    ks, km, kl = jax.random.split(key, 3)
    p_s, pd_s, label_s, bboxes_s = _make_layer_data(ks, B, img_size // strides[0], A, NC, N, img_size)
    p_m, pd_m, label_m, bboxes_m = _make_layer_data(km, B, img_size // strides[1], A, NC, N, img_size)
    p_l, pd_l, label_l, bboxes_l = _make_layer_data(kl, B, img_size // strides[2], A, NC, N, img_size)

    loss, loss_iou, loss_conf, loss_cls = loss_yolov3(
        (p_s, p_m, p_l), (pd_s, pd_m, pd_l),
        label_s, label_m, label_l,
        bboxes_s, bboxes_m, bboxes_l,
        strides=strides, iou_threshold_loss=0.5)

    jax.block_until_ready((loss, loss_iou, loss_conf, loss_cls))
    print("KERNEL_OK")
</pallas_src>

<mosaic_0001>
module attributes {stable_mosaic.version = 11 : i64} {
  func.func @_loss_layer_kernel(%arg0: i32, %arg1: i32, %arg2: memref<1x4x16x128xf32, #tpu.memory_space<vmem>>, %arg3: memref<1x5x16x128xbf16, #tpu.memory_space<vmem>>, %arg4: memref<1x4x16x128xf32, #tpu.memory_space<vmem>>, %arg5: memref<1x6x16x128xbf16, #tpu.memory_space<vmem>>, %arg6: memref<80xf32, #tpu.memory_space<smem>>, %arg7: memref<1x48x128xf32, #tpu.memory_space<vmem>>) attributes {dimension_semantics = [#tpu.dimension_semantics<parallel>, #tpu.dimension_semantics<arbitrary>], iteration_bounds = array<i64: 2, 1>, scalar_prefetch = 0 : i64, scratch_operands = 0 : i64, tpu.core_type = #tpu.core_type<tc>, window_params = [{transform_indices = @transform_0, window_bounds = array<i64: 1, 4, 16, 128>}, {transform_indices = @transform_1, window_bounds = array<i64: 1, 5, 16, 128>}, {transform_indices = @transform_2, window_bounds = array<i64: 1, 4, 16, 128>}, {transform_indices = @transform_3, window_bounds = array<i64: 1, 6, 16, 128>}, {transform_indices = @transform_4, window_bounds = array<i64: 80>}, {transform_indices = @transform_5, window_bounds = array<i64: 1, 48, 128>}]} {
    %c0_i32 = arith.constant 0 : i32
    %0 = arith.cmpi eq, %arg1, %c0_i32 : i32
    %1 = arith.extui %0 : i1 to i32
    %c0_i32_0 = arith.constant 0 : i32
    %2 = arith.cmpi ne, %1, %c0_i32_0 : i32
    scf.if %2 {
      %cst_170 = arith.constant 0.000000e+00 : f32
      %631 = vector.broadcast %cst_170 : f32 to vector<48x128xf32>
      %c0_171 = arith.constant 0 : index
      %c0_172 = arith.constant 0 : index
      %c0_173 = arith.constant 0 : index
      %632 = vector.load %arg7[%c0_171, %c0_172, %c0_173] : memref<1x48x128xf32, #tpu.memory_space<vmem>>, vector<1x48x128xf32>
      %633 = vector.shape_cast %632 : vector<1x48x128xf32> to vector<48x128xf32>
      %634 = vector.shape_cast %631 : vector<48x128xf32> to vector<1x48x128xf32>
      tpu.vector_store %arg7[%c0_171, %c0_172, %c0_173], %634 {strides = array<i32>} : memref<1x48x128xf32, #tpu.memory_space<vmem>>, vector<1x48x128xf32>,
    } else {
    }
    %c40_i32 = arith.constant 40 : i32
    %3 = arith.muli %arg0, %c40_i32 : i32
    %c0_i32_1 = arith.constant 0 : i32
    %4 = arith.addi %3, %c0_i32_1 : i32
    %c0_i32_2 = arith.constant 0 : i32
    %5 = arith.addi %4, %c0_i32_2 : i32
    %6 = arith.index_cast %5 : i32 to index
    %7 = memref.load %arg6[%6] : memref<80xf32, #tpu.memory_space<smem>>
    %c1_i32 = arith.constant 1 : i32
    %8 = arith.addi %4, %c1_i32 : i32
    %9 = arith.index_cast %8 : i32 to index
    %10 = memref.load %arg6[%9] : memref<80xf32, #tpu.memory_space<smem>>
    %c2_i32 = arith.constant 2 : i32
    %11 = arith.addi %4, %c2_i32 : i32
    %12 = arith.index_cast %11 : i32 to index
    %13 = memref.load %arg6[%12] : memref<80xf32, #tpu.memory_space<smem>>
    %c3_i32 = arith.constant 3 : i32
    %14 = arith.addi %4, %c3_i32 : i32
    %15 = arith.index_cast %14 : i32 to index
    %16 = memref.load %arg6[%15] : memref<80xf32, #tpu.memory_space<smem>>
    %c4_i32 = arith.constant 4 : i32
    %17 = arith.addi %4, %c4_i32 : i32
    %18 = arith.index_cast %17 : i32 to index
    %19 = memref.load %arg6[%18] : memref<80xf32, #tpu.memory_space<smem>>
    %c5_i32 = arith.constant 5 : i32
    %20 = arith.addi %3, %c5_i32 : i32
    %c0_i32_3 = arith.constant 0 : i32
    %21 = arith.addi %20, %c0_i32_3 : i32
    %22 = arith.index_cast %21 : i32 to index
    %23 = memref.load %arg6[%22] : memref<80xf32, #tpu.memory_space<smem>>
    %c1_i32_4 = arith.constant 1 : i32
    %24 = arith.addi %20, %c1_i32_4 : i32
    %25 = arith.index_cast %24 : i32 to index
    %26 = memref.load %arg6[%25] : memref<80xf32, #tpu.memory_space<smem>>
    %c2_i32_5 = arith.constant 2 : i32
    %27 = arith.addi %20, %c2_i32_5 : i32
    %28 = arith.index_cast %27 : i32 to index
    %29 = memref.load %arg6[%28] : memref<80xf32, #tpu.memory_space<smem>>
    %c3_i32_6 = arith.constant 3 : i32
    %30 = arith.addi %20, %c3_i32_6 : i32
    %31 = arith.index_cast %30 : i32 to index
    %32 = memref.load %arg6[%31] : memref<80xf32, #tpu.memory_space<smem>>
    %c4_i32_7 = arith.constant 4 : i32
    %33 = arith.addi %20, %c4_i32_7 : i32
    %34 = arith.index_cast %33 : i32 to index
    %35 = memref.load %arg6[%34] : memref<80xf32, #tpu.memory_space<smem>>
    %c10_i32 = arith.constant 10 : i32
    %36 = arith.addi %3, %c10_i32 : i32
    %c0_i32_8 = arith.constant 0 : i32
    %37 = arith.addi %36, %c0_i32_8 : i32
    %38 = arith.index_cast %37 : i32 to index
    %39 = memref.load %arg6[%38] : memref<80xf32, #tpu.memory_space<smem>>
    %c1_i32_9 = arith.constant 1 : i32
    %40 = arith.addi %36, %c1_i32_9 : i32
    %41 = arith.index_cast %40 : i32 to index
    %42 = memref.load %arg6[%41] : memref<80xf32, #tpu.memory_space<smem>>
    %c2_i32_10 = arith.constant 2 : i32
    %43 = arith.addi %36, %c2_i32_10 : i32
    %44 = arith.index_cast %43 : i32 to index
    %45 = memref.load %arg6[%44] : memref<80xf32, #tpu.memory_space<smem>>
    %c3_i32_11 = arith.constant 3 : i32
    %46 = arith.addi %36, %c3_i32_11 : i32
    %47 = arith.index_cast %46 : i32 to index
    %48 = memref.load %arg6[%47] : memref<80xf32, #tpu.memory_space<smem>>
    %c4_i32_12 = arith.constant 4 : i32
    %49 = arith.addi %36, %c4_i32_12 : i32
    %50 = arith.index_cast %49 : i32 to index
    %51 = memref.load %arg6[%50] : memref<80xf32, #tpu.memory_space<smem>>
    %c15_i32 = arith.constant 15 : i32
    %52 = arith.addi %3, %c15_i32 : i32
    %c0_i32_13 = arith.constant 0 : i32
    %53 = arith.addi %52, %c0_i32_13 : i32
    %54 = arith.index_cast %53 : i32 to index
    %55 = memref.load %arg6[%54] : memref<80xf32, #tpu.memory_space<smem>>
    %c1_i32_14 = arith.constant 1 : i32
    %56 = arith.addi %52, %c1_i32_14 : i32
    %57 = arith.index_cast %56 : i32 to index
    %58 = memref.load %arg6[%57] : memref<80xf32, #tpu.memory_space<smem>>
    %c2_i32_15 = arith.constant 2 : i32
    %59 = arith.addi %52, %c2_i32_15 : i32
    %60 = arith.index_cast %59 : i32 to index
    %61 = memref.load %arg6[%60] : memref<80xf32, #tpu.memory_space<smem>>
    %c3_i32_16 = arith.constant 3 : i32
    %62 = arith.addi %52, %c3_i32_16 : i32
    %63 = arith.index_cast %62 : i32 to index
    %64 = memref.load %arg6[%63] : memref<80xf32, #tpu.memory_space<smem>>
    %c4_i32_17 = arith.constant 4 : i32
    %65 = arith.addi %52, %c4_i32_17 : i32
    %66 = arith.index_cast %65 : i32 to index
    %67 = memref.load %arg6[%66] : memref<80xf32, #tpu.memory_space<smem>>
    %c20_i32 = arith.constant 20 : i32
    %68 = arith.addi %3, %c20_i32 : i32
    %c0_i32_18 = arith.constant 0 : i32
    %69 = arith.addi %68, %c0_i32_18 : i32
    %70 = arith.index_cast %69 : i32 to index
    %71 = memref.load %arg6[%70] : memref<80xf32, #tpu.memory_space<smem>>
    %c1_i32_19 = arith.constant 1 : i32
    %72 = arith.addi %68, %c1_i32_19 : i32
    %73 = arith.index_cast %72 : i32 to index
    %74 = memref.load %arg6[%73] : memref<80xf32, #tpu.memory_space<smem>>
    %c2_i32_20 = arith.constant 2 : i32
    %75 = arith.addi %68, %c2_i32_20 : i32
    %76 = arith.index_cast %75 : i32 to index
    %77 = memref.load %arg6[%76] : memref<80xf32, #tpu.memory_space<smem>>
    %c3_i32_21 = arith.constant 3 : i32
    %78 = arith.addi %68, %c3_i32_21 : i32
    %79 = arith.index_cast %78 : i32 to index
    %80 = memref.load %arg6[%79] : memref<80xf32, #tpu.memory_space<smem>>
    %c4_i32_22 = arith.constant 4 : i32
    %81 = arith.addi %68, %c4_i32_22 : i32
    %82 = arith.index_cast %81 : i32 to index
    %83 = memref.load %arg6[%82] : memref<80xf32, #tpu.memory_space<smem>>
    %c25_i32 = arith.constant 25 : i32
    %84 = arith.addi %3, %c25_i32 : i32
    %c0_i32_23 = arith.constant 0 : i32
    %85 = arith.addi %84, %c0_i32_23 : i32
    %86 = arith.index_cast %85 : i32 to index
    %87 = memref.load %arg6[%86] : memref<80xf32, #tpu.memory_space<smem>>
    %c1_i32_24 = arith.constant 1 : i32
    %88 = arith.addi %84, %c1_i32_24 : i32
    %89 = arith.index_cast %88 : i32 to index
    %90 = memref.load %arg6[%89] : memref<80xf32, #tpu.memory_space<smem>>
    %c2_i32_25 = arith.constant 2 : i32
    %91 = arith.addi %84, %c2_i32_25 : i32
    %92 = arith.index_cast %91 : i32 to index
    %93 = memref.load %arg6[%92] : memref<80xf32, #tpu.memory_space<smem>>
    %c3_i32_26 = arith.constant 3 : i32
    %94 = arith.addi %84, %c3_i32_26 : i32
    %95 = arith.index_cast %94 : i32 to index
    %96 = memref.load %arg6[%95] : memref<80xf32, #tpu.memory_space<smem>>
    %c4_i32_27 = arith.constant 4 : i32
    %97 = arith.addi %84, %c4_i32_27 : i32
    %98 = arith.index_cast %97 : i32 to index
    %99 = memref.load %arg6[%98] : memref<80xf32, #tpu.memory_space<smem>>
    %c30_i32 = arith.constant 30 : i32
    %100 = arith.addi %3, %c30_i32 : i32
    %c0_i32_28 = arith.constant 0 : i32
    %101 = arith.addi %100, %c0_i32_28 : i32
    %102 = arith.index_cast %101 : i32 to index
    %103 = memref.load %arg6[%102] : memref<80xf32, #tpu.memory_space<smem>>
    %c1_i32_29 = arith.constant 1 : i32
    %104 = arith.addi %100, %c1_i32_29 : i32
    %105 = arith.index_cast %104 : i32 to index
    %106 = memref.load %arg6[%105] : memref<80xf32, #tpu.memory_space<smem>>
    %c2_i32_30 = arith.constant 2 : i32
    %107 = arith.addi %100, %c2_i32_30 : i32
    %108 = arith.index_cast %107 : i32 to index
    %109 = memref.load %arg6[%108] : memref<80xf32, #tpu.memory_space<smem>>
    %c3_i32_31 = arith.constant 3 : i32
    %110 = arith.addi %100, %c3_i32_31 : i32
    %111 = arith.index_cast %110 : i32 to index
    %112 = memref.load %arg6[%111] : memref<80xf32, #tpu.memory_space<smem>>
    %c4_i32_32 = arith.constant 4 : i32
    %113 = arith.addi %100, %c4_i32_32 : i32
    %114 = arith.index_cast %113 : i32 to index
    %115 = memref.load %arg6[%114] : memref<80xf32, #tpu.memory_space<smem>>
    %c35_i32 = arith.constant 35 : i32
    %116 = arith.addi %3, %c35_i32 : i32
    %c0_i32_33 = arith.constant 0 : i32
    %117 = arith.addi %116, %c0_i32_33 : i32
    %118 = arith.index_cast %117 : i32 to index
    %119 = memref.load %arg6[%118] : memref<80xf32, #tpu.memory_space<smem>>
    %c1_i32_34 = arith.constant 1 : i32
    %120 = arith.addi %116, %c1_i32_34 : i32
    %121 = arith.index_cast %120 : i32 to index
    %122 = memref.load %arg6[%121] : memref<80xf32, #tpu.memory_space<smem>>
    %c2_i32_35 = arith.constant 2 : i32
    %123 = arith.addi %116, %c2_i32_35 : i32
    %124 = arith.index_cast %123 : i32 to index
    %125 = memref.load %arg6[%124] : memref<80xf32, #tpu.memory_space<smem>>
    %c3_i32_36 = arith.constant 3 : i32
    %126 = arith.addi %116, %c3_i32_36 : i32
    %127 = arith.index_cast %126 : i32 to index
    %128 = memref.load %arg6[%127] : memref<80xf32, #tpu.memory_space<smem>>
    %c4_i32_37 = arith.constant 4 : i32
    %129 = arith.addi %116, %c4_i32_37 : i32
    %130 = arith.index_cast %129 : i32 to index
    %131 = memref.load %arg6[%130] : memref<80xf32, #tpu.memory_space<smem>>
    %c0_i32_38 = arith.constant 0 : i32
    %c16_i32 = arith.constant 16 : i32
    %132 = arith.muli %c0_i32_38, %c16_i32 : i32
    %133 = tpu.assume_multiple %132, 16 : i32
    %c0 = arith.constant 0 : index
    %c0_39 = arith.constant 0 : index
    %134 = arith.index_cast %133 : i32 to index
    %c0_40 = arith.constant 0 : index
    %135 = vector.load %arg2[%c0, %c0_39, %134, %c0_40] : memref<1x4x16x128xf32, #tpu.memory_space<vmem>>, vector<1x1x16x128xf32>
    %136 = vector.shape_cast %135 : vector<1x1x16x128xf32> to vector<16x128xf32>
    %c0_41 = arith.constant 0 : index
    %c1 = arith.constant 1 : index
    %137 = arith.index_cast %133 : i32 to index
    %c0_42 = arith.constant 0 : index
    %138 = vector.load %arg2[%c0_41, %c1, %137, %c0_42] : memref<1x4x16x128xf32, #tpu.memory_space<vmem>>, vector<1x1x16x128xf32>
    %139 = vector.shape_cast %138 : vector<1x1x16x128xf32> to vector<16x128xf32>
    %c0_43 = arith.constant 0 : index
    %c2 = arith.constant 2 : index
    %140 = arith.index_cast %133 : i32 to index
    %c0_44 = arith.constant 0 : index
    %141 = vector.load %arg2[%c0_43, %c2, %140, %c0_44] : memref<1x4x16x128xf32, #tpu.memory_space<vmem>>, vector<1x1x16x128xf32>
    %142 = vector.shape_cast %141 : vector<1x1x16x128xf32> to vector<16x128xf32>
    %c0_45 = arith.constant 0 : index
    %c3 = arith.constant 3 : index
    %143 = arith.index_cast %133 : i32 to index
    %c0_46 = arith.constant 0 : index
    %144 = vector.load %arg2[%c0_45, %c3, %143, %c0_46] : memref<1x4x16x128xf32, #tpu.memory_space<vmem>>, vector<1x1x16x128xf32>
    %145 = vector.shape_cast %144 : vector<1x1x16x128xf32> to vector<16x128xf32>
    %c0_47 = arith.constant 0 : index
    %c0_48 = arith.constant 0 : index
    %146 = arith.index_cast %133 : i32 to index
    %c0_49 = arith.constant 0 : index
    %147 = vector.load %arg4[%c0_47, %c0_48, %146, %c0_49] : memref<1x4x16x128xf32, #tpu.memory_space<vmem>>, vector<1x1x16x128xf32>
    %148 = vector.shape_cast %147 : vector<1x1x16x128xf32> to vector<16x128xf32>
    %c0_50 = arith.constant 0 : index
    %c1_51 = arith.constant 1 : index
    %149 = arith.index_cast %133 : i32 to index
    %c0_52 = arith.constant 0 : index
    %150 = vector.load %arg4[%c0_50, %c1_51, %149, %c0_52] : memref<1x4x16x128xf32, #tpu.memory_space<vmem>>, vector<1x1x16x128xf32>
    %151 = vector.shape_cast %150 : vector<1x1x16x128xf32> to vector<16x128xf32>
    %c0_53 = arith.constant 0 : index
    %c2_54 = arith.constant 2 : index
    %152 = arith.index_cast %133 : i32 to index
    %c0_55 = arith.constant 0 : index
    %153 = vector.load %arg4[%c0_53, %c2_54, %152, %c0_55] : memref<1x4x16x128xf32, #tpu.memory_space<vmem>>, vector<1x1x16x128xf32>
    %154 = vector.shape_cast %153 : vector<1x1x16x128xf32> to vector<16x128xf32>
    %c0_56 = arith.constant 0 : index
    %c3_57 = arith.constant 3 : index
    %155 = arith.index_cast %133 : i32 to index
    %c0_58 = arith.constant 0 : index
    %156 = vector.load %arg4[%c0_56, %c3_57, %155, %c0_58] : memref<1x4x16x128xf32, #tpu.memory_space<vmem>>, vector<1x1x16x128xf32>
    %157 = vector.shape_cast %156 : vector<1x1x16x128xf32> to vector<16x128xf32>
    %c0_59 = arith.constant 0 : index
    %c0_60 = arith.constant 0 : index
    %158 = arith.index_cast %133 : i32 to index
    %c0_61 = arith.constant 0 : index
    %159 = vector.load %arg5[%c0_59, %c0_60, %158, %c0_61] : memref<1x6x16x128xbf16, #tpu.memory_space<vmem>>, vector<1x1x16x128xbf16>
    %160 = vector.shape_cast %159 : vector<1x1x16x128xbf16> to vector<16x128xbf16>
    %161 = arith.extf %160 : vector<16x128xbf16> to vector<16x128xf32>
    %c0_62 = arith.constant 0 : index
    %c1_63 = arith.constant 1 : index
    %162 = arith.index_cast %133 : i32 to index
    %c0_64 = arith.constant 0 : index
    %163 = vector.load %arg5[%c0_62, %c1_63, %162, %c0_64] : memref<1x6x16x128xbf16, #tpu.memory_space<vmem>>, vector<1x1x16x128xbf16>
    %164 = vector.shape_cast %163 : vector<1x1x16x128xbf16> to vector<16x128xbf16>
    %165 = arith.extf %164 : vector<16x128xbf16> to vector<16x128xf32>
    %cst = arith.constant 5.000000e-01 : f32
    %166 = vector.broadcast %cst : f32 to vector<16x128xf32>
    %167 = arith.mulf %142, %166 : vector<16x128xf32>
    %cst_65 = arith.constant 5.000000e-01 : f32
    %168 = vector.broadcast %cst_65 : f32 to vector<16x128xf32>
    %169 = arith.mulf %145, %168 : vector<16x128xf32>
    %170 = arith.subf %136, %167 : vector<16x128xf32>
    %171 = arith.addf %136, %167 : vector<16x128xf32>
    %172 = arith.subf %139, %169 : vector<16x128xf32>
    %173 = arith.addf %139, %169 : vector<16x128xf32>
    %174 = arith.minimumf %170, %171 : vector<16x128xf32>
    %175 = arith.maximumf %170, %171 : vector<16x128xf32>
    %176 = arith.minimumf %172, %173 : vector<16x128xf32>
    %177 = arith.maximumf %172, %173 : vector<16x128xf32>
    %cst_66 = arith.constant 5.000000e-01 : f32
    %178 = vector.broadcast %cst_66 : f32 to vector<16x128xf32>
    %179 = arith.mulf %154, %178 : vector<16x128xf32>
    %cst_67 = arith.constant 5.000000e-01 : f32
    %180 = vector.broadcast %cst_67 : f32 to vector<16x128xf32>
    %181 = arith.mulf %157, %180 : vector<16x128xf32>
    %182 = arith.subf %148, %179 : vector<16x128xf32>
    %183 = arith.addf %148, %179 : vector<16x128xf32>
    %184 = arith.subf %151, %181 : vector<16x128xf32>
    %185 = arith.addf %151, %181 : vector<16x128xf32>
    %186 = arith.minimumf %182, %183 : vector<16x128xf32>
    %187 = arith.maximumf %182, %183 : vector<16x128xf32>
    %188 = arith.minimumf %184, %185 : vector<16x128xf32>
    %189 = arith.maximumf %184, %185 : vector<16x128xf32>
    %190 = arith.subf %175, %174 : vector<16x128xf32>
    %191 = arith.subf %177, %176 : vector<16x128xf32>
    %192 = arith.mulf %190, %191 : vector<16x128xf32>
    %193 = arith.subf %187, %186 : vector<16x128xf32>
    %194 = arith.subf %189, %188 : vector<16x128xf32>
    %195 = arith.mulf %193, %194 : vector<16x128xf32>
    %196 = arith.minimumf %175, %187 : vector<16x128xf32>
    %197 = arith.maximumf %174, %186 : vector<16x128xf32>
    %198 = arith.subf %196, %197 : vector<16x128xf32>
    %cst_68 = arith.constant 0.000000e+00 : f32
    %199 = vector.broadcast %cst_68 : f32 to vector<16x128xf32>
    %200 = arith.maximumf %198, %199 : vector<16x128xf32>
    %201 = arith.minimumf %177, %189 : vector<16x128xf32>
    %202 = arith.maximumf %176, %188 : vector<16x128xf32>
    %203 = arith.subf %201, %202 : vector<16x128xf32>
    %cst_69 = arith.constant 0.000000e+00 : f32
    %204 = vector.broadcast %cst_69 : f32 to vector<16x128xf32>
    %205 = arith.maximumf %203, %204 : vector<16x128xf32>
    %206 = arith.mulf %200, %205 : vector<16x128xf32>
    %207 = arith.addf %192, %195 : vector<16x128xf32>
    %208 = arith.subf %207, %206 : vector<16x128xf32>
    %cst_70 = arith.constant 9.99999997E-7 : f32
    %209 = vector.broadcast %cst_70 : f32 to vector<16x128xf32>
    %210 = arith.addf %208, %209 : vector<16x128xf32>
    %211 = tpu.reciprocal %210 {approx = true} : vector<16x128xf32> -> vector<16x128xf32>
    %212 = arith.mulf %206, %211 : vector<16x128xf32>
    %213 = arith.maximumf %175, %187 : vector<16x128xf32>
    %214 = arith.minimumf %174, %186 : vector<16x128xf32>
    %215 = arith.subf %213, %214 : vector<16x128xf32>
    %216 = arith.maximumf %177, %189 : vector<16x128xf32>
    %217 = arith.minimumf %176, %188 : vector<16x128xf32>
    %218 = arith.subf %216, %217 : vector<16x128xf32>
    %219 = arith.mulf %215, %215 : vector<16x128xf32>
    %220 = arith.mulf %218, %218 : vector<16x128xf32>
    %221 = arith.addf %219, %220 : vector<16x128xf32>
    %222 = arith.subf %136, %148 : vector<16x128xf32>
    %223 = arith.subf %136, %148 : vector<16x128xf32>
    %224 = arith.mulf %222, %223 : vector<16x128xf32>
    %225 = arith.subf %139, %151 : vector<16x128xf32>
    %226 = arith.subf %139, %151 : vector<16x128xf32>
    %227 = arith.mulf %225, %226 : vector<16x128xf32>
    %228 = arith.addf %224, %227 : vector<16x128xf32>
    %229 = math.absf %154 : vector<16x128xf32>
    %230 = math.absf %157 : vector<16x128xf32>
    %cst_71 = arith.constant 9.99999997E-7 : f32
    %231 = vector.broadcast %cst_71 : f32 to vector<16x128xf32>
    %232 = arith.maximumf %230, %231 : vector<16x128xf32>
    %233 = arith.minimumf %229, %232 : vector<16x128xf32>
    %234 = arith.maximumf %229, %232 : vector<16x128xf32>
    %cst_72 = arith.constant 0.414213568 : f32
    %235 = vector.broadcast %cst_72 : f32 to vector<16x128xf32>
    %236 = arith.mulf %235, %234 : vector<16x128xf32>
    %237 = arith.cmpf ogt, %233, %236 : vector<16x128xf32>
    %238 = arith.subf %233, %234 : vector<16x128xf32>
    %239 = arith.select %237, %238, %233 : vector<16x128xi1>, vector<16x128xf32>
    %240 = arith.addf %233, %234 : vector<16x128xf32>
    %241 = arith.select %237, %240, %234 : vector<16x128xi1>, vector<16x128xf32>
    %242 = tpu.reciprocal %241 {approx = true} : vector<16x128xf32> -> vector<16x128xf32>
    %243 = arith.mulf %239, %242 : vector<16x128xf32>
    %244 = arith.mulf %243, %243 : vector<16x128xf32>
    %cst_73 = arith.constant 0.0805374458 : f32
    %245 = vector.broadcast %cst_73 : f32 to vector<16x128xf32>
    %246 = arith.mulf %245, %244 : vector<16x128xf32>
    %cst_74 = arith.constant 0.138776854 : f32
    %247 = vector.broadcast %cst_74 : f32 to vector<16x128xf32>
    %248 = arith.subf %246, %247 : vector<16x128xf32>
    %249 = arith.mulf %248, %244 : vector<16x128xf32>
    %cst_75 = arith.constant 0.199777111 : f32
    %250 = vector.broadcast %cst_75 : f32 to vector<16x128xf32>
    %251 = arith.addf %249, %250 : vector<16x128xf32>
    %252 = arith.mulf %251, %244 : vector<16x128xf32>
    %cst_76 = arith.constant 0.333329499 : f32
    %253 = vector.broadcast %cst_76 : f32 to vector<16x128xf32>
    %254 = arith.subf %252, %253 : vector<16x128xf32>
    %255 = arith.mulf %254, %244 : vector<16x128xf32>
    %256 = arith.mulf %255, %243 : vector<16x128xf32>
    %257 = arith.addf %256, %243 : vector<16x128xf32>
    %cst_77 = arith.constant 0.785398185 : f32
    %cst_78 = arith.constant 0.000000e+00 : f32
    %258 = vector.broadcast %cst_77 : f32 to vector<16x128xf32>
    %259 = vector.broadcast %cst_78 : f32 to vector<16x128xf32>
    %260 = arith.select %237, %258, %259 : vector<16x128xi1>, vector<16x128xf32>
    %261 = arith.addf %257, %260 : vector<16x128xf32>
    %262 = arith.cmpf ogt, %229, %232 : vector<16x128xf32>
    %cst_79 = arith.constant 1.57079637 : f32
    %263 = vector.broadcast %cst_79 : f32 to vector<16x128xf32>
    %264 = arith.subf %263, %261 : vector<16x128xf32>
    %265 = arith.select %262, %264, %261 : vector<16x128xi1>, vector<16x128xf32>
    %266 = math.absf %142 : vector<16x128xf32>
    %267 = math.absf %145 : vector<16x128xf32>
    %cst_80 = arith.constant 9.99999997E-7 : f32
    %268 = vector.broadcast %cst_80 : f32 to vector<16x128xf32>
    %269 = arith.maximumf %267, %268 : vector<16x128xf32>
    %270 = arith.minimumf %266, %269 : vector<16x128xf32>
    %271 = arith.maximumf %266, %269 : vector<16x128xf32>
    %cst_81 = arith.constant 0.414213568 : f32
    %272 = vector.broadcast %cst_81 : f32 to vector<16x128xf32>
    %273 = arith.mulf %272, %271 : vector<16x128xf32>
    %274 = arith.cmpf ogt, %270, %273 : vector<16x128xf32>
    %275 = arith.subf %270, %271 : vector<16x128xf32>
    %276 = arith.select %274, %275, %270 : vector<16x128xi1>, vector<16x128xf32>
    %277 = arith.addf %270, %271 : vector<16x128xf32>
    %278 = arith.select %274, %277, %271 : vector<16x128xi1>, vector<16x128xf32>
    %279 = tpu.reciprocal %278 {approx = true} : vector<16x128xf32> -> vector<16x128xf32>
    %280 = arith.mulf %276, %279 : vector<16x128xf32>
    %281 = arith.mulf %280, %280 : vector<16x128xf32>
    %cst_82 = arith.constant 0.0805374458 : f32
    %282 = vector.broadcast %cst_82 : f32 to vector<16x128xf32>
    %283 = arith.mulf %282, %281 : vector<16x128xf32>
    %cst_83 = arith.constant 0.138776854 : f32
    %284 = vector.broadcast %cst_83 : f32 to vector<16x128xf32>
    %285 = arith.subf %283, %284 : vector<16x128xf32>
    %286 = arith.mulf %285, %281 : vector<16x128xf32>
    %cst_84 = arith.constant 0.199777111 : f32
    %287 = vector.broadcast %cst_84 : f32 to vector<16x128xf32>
    %288 = arith.addf %286, %287 : vector<16x128xf32>
    %289 = arith.mulf %288, %281 : vector<16x128xf32>
    %cst_85 = arith.constant 0.333329499 : f32
    %290 = vector.broadcast %cst_85 : f32 to vector<16x128xf32>
    %291 = arith.subf %289, %290 : vector<16x128xf32>
    %292 = arith.mulf %291, %281 : vector<16x128xf32>
    %293 = arith.mulf %292, %280 : vector<16x128xf32>
    %294 = arith.addf %293, %280 : vector<16x128xf32>
    %cst_86 = arith.constant 0.785398185 : f32
    %cst_87 = arith.constant 0.000000e+00 : f32
    %295 = vector.broadcast %cst_86 : f32 to vector<16x128xf32>
    %296 = vector.broadcast %cst_87 : f32 to vector<16x128xf32>
    %297 = arith.select %274, %295, %296 : vector<16x128xi1>, vector<16x128xf32>
    %298 = arith.addf %294, %297 : vector<16x128xf32>
    %299 = arith.cmpf ogt, %266, %269 : vector<16x128xf32>
    %cst_88 = arith.constant 1.57079637 : f32
    %300 = vector.broadcast %cst_88 : f32 to vector<16x128xf32>
    %301 = arith.subf %300, %298 : vector<16x128xf32>
    %302 = arith.select %299, %301, %298 : vector<16x128xi1>, vector<16x128xf32>
    %303 = arith.subf %265, %302 : vector<16x128xf32>
    %cst_89 = arith.constant 0.405284733 : f32
    %304 = vector.broadcast %cst_89 : f32 to vector<16x128xf32>
    %305 = arith.mulf %304, %303 : vector<16x128xf32>
    %306 = arith.mulf %305, %303 : vector<16x128xf32>
    %cst_90 = arith.constant 1.000000e+00 : f32
    %307 = vector.broadcast %cst_90 : f32 to vector<16x128xf32>
    %308 = arith.subf %307, %212 : vector<16x128xf32>
    %309 = arith.addf %308, %306 : vector<16x128xf32>
    %cst_91 = arith.constant 9.99999997E-7 : f32
    %310 = vector.broadcast %cst_91 : f32 to vector<16x128xf32>
    %311 = arith.addf %309, %310 : vector<16x128xf32>
    %312 = tpu.reciprocal %311 {approx = true} : vector<16x128xf32> -> vector<16x128xf32>
    %313 = arith.mulf %306, %312 : vector<16x128xf32>
    %cst_92 = arith.constant 9.99999997E-7 : f32
    %314 = vector.broadcast %cst_92 : f32 to vector<16x128xf32>
    %315 = arith.addf %221, %314 : vector<16x128xf32>
    %316 = tpu.reciprocal %315 {approx = true} : vector<16x128xf32> -> vector<16x128xf32>
    %317 = arith.mulf %228, %316 : vector<16x128xf32>
    %318 = arith.mulf %313, %306 : vector<16x128xf32>
    %319 = arith.addf %317, %318 : vector<16x128xf32>
    %320 = arith.subf %212, %319 : vector<16x128xf32>
    %321 = arith.mulf %161, %165 : vector<16x128xf32>
    %322 = arith.mulf %154, %157 : vector<16x128xf32>
    %cst_93 = arith.constant 2.44140625E-4 : f32
    %323 = vector.broadcast %cst_93 : f32 to vector<16x128xf32>
    %324 = arith.mulf %322, %323 : vector<16x128xf32>
    %cst_94 = arith.constant 2.000000e+00 : f32
    %325 = vector.broadcast %cst_94 : f32 to vector<16x128xf32>
    %326 = arith.subf %325, %324 : vector<16x128xf32>
    %327 = arith.mulf %321, %326 : vector<16x128xf32>
    %cst_95 = arith.constant 1.000000e+00 : f32
    %328 = vector.broadcast %cst_95 : f32 to vector<16x128xf32>
    %329 = arith.subf %328, %320 : vector<16x128xf32>
    %330 = arith.mulf %327, %329 : vector<16x128xf32>
    %c0_96 = arith.constant 0 : index
    %c0_97 = arith.constant 0 : index
    %c0_98 = arith.constant 0 : index
    %331 = vector.load %arg7[%c0_96, %c0_97, %c0_98] : memref<1x48x128xf32, #tpu.memory_space<vmem>>, vector<1x16x128xf32>
    %332 = vector.shape_cast %331 : vector<1x16x128xf32> to vector<16x128xf32>
    %333 = arith.addf %332, %330 : vector<16x128xf32>
    %c0_99 = arith.constant 0 : index
    %c0_100 = arith.constant 0 : index
    %c0_101 = arith.constant 0 : index
    %334 = vector.load %arg7[%c0_99, %c0_100, %c0_101] : memref<1x48x128xf32, #tpu.memory_space<vmem>>, vector<1x16x128xf32>
    %335 = vector.shape_cast %334 : vector<1x16x128xf32> to vector<16x128xf32>
    %336 = vector.shape_cast %333 : vector<16x128xf32> to vector<1x16x128xf32>
    tpu.vector_store %arg7[%c0_99, %c0_100, %c0_101], %336 {strides = array<i32>} : memref<1x48x128xf32, #tpu.memory_space<vmem>>, vector<1x16x128xf32>,
    %337 = arith.mulf %142, %145 : vector<16x128xf32>
    %cst_102 = arith.constant 0.000000e+00 : f32
    %338 = vector.broadcast %cst_102 : f32 to vector<16x128xf32>
    %339 = vector.broadcast %13 : f32 to vector<16x128xf32>
    %340 = arith.minimumf %175, %339 : vector<16x128xf32>
    %341 = vector.broadcast %7 : f32 to vector<16x128xf32>
    %342 = arith.maximumf %174, %341 : vector<16x128xf32>
    %343 = arith.subf %340, %342 : vector<16x128xf32>
    %cst_103 = arith.constant 0.000000e+00 : f32
    %344 = vector.broadcast %cst_103 : f32 to vector<16x128xf32>
    %345 = arith.maximumf %343, %344 : vector<16x128xf32>
    %346 = vector.broadcast %16 : f32 to vector<16x128xf32>
    %347 = arith.minimumf %177, %346 : vector<16x128xf32>
    %348 = vector.broadcast %10 : f32 to vector<16x128xf32>
    %349 = arith.maximumf %176, %348 : vector<16x128xf32>
    %350 = arith.subf %347, %349 : vector<16x128xf32>
    %cst_104 = arith.constant 0.000000e+00 : f32
    %351 = vector.broadcast %cst_104 : f32 to vector<16x128xf32>
    %352 = arith.maximumf %350, %351 : vector<16x128xf32>
    %353 = arith.mulf %345, %352 : vector<16x128xf32>
    %354 = vector.broadcast %19 : f32 to vector<16x128xf32>
    %355 = arith.addf %337, %354 : vector<16x128xf32>
    %356 = arith.subf %355, %353 : vector<16x128xf32>
    %357 = tpu.reciprocal %356 {approx = true} : vector<16x128xf32> -> vector<16x128xf32>
    %358 = arith.mulf %353, %357 : vector<16x128xf32>
    %359 = arith.maximumf %338, %358 : vector<16x128xf32>
    %360 = vector.broadcast %29 : f32 to vector<16x128xf32>
    %361 = arith.minimumf %175, %360 : vector<16x128xf32>
    %362 = vector.broadcast %23 : f32 to vector<16x128xf32>
    %363 = arith.maximumf %174, %362 : vector<16x128xf32>
    %364 = arith.subf %361, %363 : vector<16x128xf32>
    %cst_105 = arith.constant 0.000000e+00 : f32
    %365 = vector.broadcast %cst_105 : f32 to vector<16x128xf32>
    %366 = arith.maximumf %364, %365 : vector<16x128xf32>
    %367 = vector.broadcast %32 : f32 to vector<16x128xf32>
    %368 = arith.minimumf %177, %367 : vector<16x128xf32>
    %369 = vector.broadcast %26 : f32 to vector<16x128xf32>
    %370 = arith.maximumf %176, %369 : vector<16x128xf32>
    %371 = arith.subf %368, %370 : vector<16x128xf32>
    %cst_106 = arith.constant 0.000000e+00 : f32
    %372 = vector.broadcast %cst_106 : f32 to vector<16x128xf32>
    %373 = arith.maximumf %371, %372 : vector<16x128xf32>
    %374 = arith.mulf %366, %373 : vector<16x128xf32>
    %375 = vector.broadcast %35 : f32 to vector<16x128xf32>
    %376 = arith.addf %337, %375 : vector<16x128xf32>
    %377 = arith.subf %376, %374 : vector<16x128xf32>
    %378 = tpu.reciprocal %377 {approx = true} : vector<16x128xf32> -> vector<16x128xf32>
    %379 = arith.mulf %374, %378 : vector<16x128xf32>
    %380 = arith.maximumf %359, %379 : vector<16x128xf32>
    %381 = vector.broadcast %45 : f32 to vector<16x128xf32>
    %382 = arith.minimumf %175, %381 : vector<16x128xf32>
    %383 = vector.broadcast %39 : f32 to vector<16x128xf32>
    %384 = arith.maximumf %174, %383 : vector<16x128xf32>
    %385 = arith.subf %382, %384 : vector<16x128xf32>
    %cst_107 = arith.constant 0.000000e+00 : f32
    %386 = vector.broadcast %cst_107 : f32 to vector<16x128xf32>
    %387 = arith.maximumf %385, %386 : vector<16x128xf32>
    %388 = vector.broadcast %48 : f32 to vector<16x128xf32>
    %389 = arith.minimumf %177, %388 : vector<16x128xf32>
    %390 = vector.broadcast %42 : f32 to vector<16x128xf32>
    %391 = arith.maximumf %176, %390 : vector<16x128xf32>
    %392 = arith.subf %389, %391 : vector<16x128xf32>
    %cst_108 = arith.constant 0.000000e+00 : f32
    %393 = vector.broadcast %cst_108 : f32 to vector<16x128xf32>
    %394 = arith.maximumf %392, %393 : vector<16x128xf32>
    %395 = arith.mulf %387, %394 : vector<16x128xf32>
    %396 = vector.broadcast %51 : f32 to vector<16x128xf32>
    %397 = arith.addf %337, %396 : vector<16x128xf32>
    %398 = arith.subf %397, %395 : vector<16x128xf32>
    %399 = tpu.reciprocal %398 {approx = true} : vector<16x128xf32> -> vector<16x128xf32>
    %400 = arith.mulf %395, %399 : vector<16x128xf32>
    %401 = arith.maximumf %380, %400 : vector<16x128xf32>
    %402 = vector.broadcast %61 : f32 to vector<16x128xf32>
    %403 = arith.minimumf %175, %402 : vector<16x128xf32>
    %404 = vector.broadcast %55 : f32 to vector<16x128xf32>
    %405 = arith.maximumf %174, %404 : vector<16x128xf32>
    %406 = arith.subf %403, %405 : vector<16x128xf32>
    %cst_109 = arith.constant 0.000000e+00 : f32
    %407 = vector.broadcast %cst_109 : f32 to vector<16x128xf32>
    %408 = arith.maximumf %406, %407 : vector<16x128xf32>
    %409 = vector.broadcast %64 : f32 to vector<16x128xf32>
    %410 = arith.minimumf %177, %409 : vector<16x128xf32>
    %411 = vector.broadcast %58 : f32 to vector<16x128xf32>
    %412 = arith.maximumf %176, %411 : vector<16x128xf32>
    %413 = arith.subf %410, %412 : vector<16x128xf32>
    %cst_110 = arith.constant 0.000000e+00 : f32
    %414 = vector.broadcast %cst_110 : f32 to vector<16x128xf32>
    %415 = arith.maximumf %413, %414 : vector<16x128xf32>
    %416 = arith.mulf %408, %415 : vector<16x128xf32>
    %417 = vector.broadcast %67 : f32 to vector<16x128xf32>
    %418 = arith.addf %337, %417 : vector<16x128xf32>
    %419 = arith.subf %418, %416 : vector<16x128xf32>
    %420 = tpu.reciprocal %419 {approx = true} : vector<16x128xf32> -> vector<16x128xf32>
    %421 = arith.mulf %416, %420 : vector<16x128xf32>
    %422 = arith.maximumf %401, %421 : vector<16x128xf32>
    %423 = vector.broadcast %77 : f32 to vector<16x128xf32>
    %424 = arith.minimumf %175, %423 : vector<16x128xf32>
    %425 = vector.broadcast %71 : f32 to vector<16x128xf32>
    %426 = arith.maximumf %174, %425 : vector<16x128xf32>
    %427 = arith.subf %424, %426 : vector<16x128xf32>
    %cst_111 = arith.constant 0.000000e+00 : f32
    %428 = vector.broadcast %cst_111 : f32 to vector<16x128xf32>
    %429 = arith.maximumf %427, %428 : vector<16x128xf32>
    %430 = vector.broadcast %80 : f32 to vector<16x128xf32>
    %431 = arith.minimumf %177, %430 : vector<16x128xf32>
    %432 = vector.broadcast %74 : f32 to vector<16x128xf32>
    %433 = arith.maximumf %176, %432 : vector<16x128xf32>
    %434 = arith.subf %431, %433 : vector<16x128xf32>
    %cst_112 = arith.constant 0.000000e+00 : f32
    %435 = vector.broadcast %cst_112 : f32 to vector<16x128xf32>
    %436 = arith.maximumf %434, %435 : vector<16x128xf32>
    %437 = arith.mulf %429, %436 : vector<16x128xf32>
    %438 = vector.broadcast %83 : f32 to vector<16x128xf32>
    %439 = arith.addf %337, %438 : vector<16x128xf32>
    %440 = arith.subf %439, %437 : vector<16x128xf32>
    %441 = tpu.reciprocal %440 {approx = true} : vector<16x128xf32> -> vector<16x128xf32>
    %442 = arith.mulf %437, %441 : vector<16x128xf32>
    %443 = arith.maximumf %422, %442 : vector<16x128xf32>
    %444 = vector.broadcast %93 : f32 to vector<16x128xf32>
    %445 = arith.minimumf %175, %444 : vector<16x128xf32>
    %446 = vector.broadcast %87 : f32 to vector<16x128xf32>
    %447 = arith.maximumf %174, %446 : vector<16x128xf32>
    %448 = arith.subf %445, %447 : vector<16x128xf32>
    %cst_113 = arith.constant 0.000000e+00 : f32
    %449 = vector.broadcast %cst_113 : f32 to vector<16x128xf32>
    %450 = arith.maximumf %448, %449 : vector<16x128xf32>
    %451 = vector.broadcast %96 : f32 to vector<16x128xf32>
    %452 = arith.minimumf %177, %451 : vector<16x128xf32>
    %453 = vector.broadcast %90 : f32 to vector<16x128xf32>
    %454 = arith.maximumf %176, %453 : vector<16x128xf32>
    %455 = arith.subf %452, %454 : vector<16x128xf32>
    %cst_114 = arith.constant 0.000000e+00 : f32
    %456 = vector.broadcast %cst_114 : f32 to vector<16x128xf32>
    %457 = arith.maximumf %455, %456 : vector<16x128xf32>
    %458 = arith.mulf %450, %457 : vector<16x128xf32>
    %459 = vector.broadcast %99 : f32 to vector<16x128xf32>
    %460 = arith.addf %337, %459 : vector<16x128xf32>
    %461 = arith.subf %460, %458 : vector<16x128xf32>
    %462 = tpu.reciprocal %461 {approx = true} : vector<16x128xf32> -> vector<16x128xf32>
    %463 = arith.mulf %458, %462 : vector<16x128xf32>
    %464 = arith.maximumf %443, %463 : vector<16x128xf32>
    %465 = vector.broadcast %109 : f32 to vector<16x128xf32>
    %466 = arith.minimumf %175, %465 : vector<16x128xf32>
    %467 = vector.broadcast %103 : f32 to vector<16x128xf32>
    %468 = arith.maximumf %174, %467 : vector<16x128xf32>
    %469 = arith.subf %466, %468 : vector<16x128xf32>
    %cst_115 = arith.constant 0.000000e+00 : f32
    %470 = vector.broadcast %cst_115 : f32 to vector<16x128xf32>
    %471 = arith.maximumf %469, %470 : vector<16x128xf32>
    %472 = vector.broadcast %112 : f32 to vector<16x128xf32>
    %473 = arith.minimumf %177, %472 : vector<16x128xf32>
    %474 = vector.broadcast %106 : f32 to vector<16x128xf32>
    %475 = arith.maximumf %176, %474 : vector<16x128xf32>
    %476 = arith.subf %473, %475 : vector<16x128xf32>
    %cst_116 = arith.constant 0.000000e+00 : f32
    %477 = vector.broadcast %cst_116 : f32 to vector<16x128xf32>
    %478 = arith.maximumf %476, %477 : vector<16x128xf32>
    %479 = arith.mulf %471, %478 : vector<16x128xf32>
    %480 = vector.broadcast %115 : f32 to vector<16x128xf32>
    %481 = arith.addf %337, %480 : vector<16x128xf32>
    %482 = arith.subf %481, %479 : vector<16x128xf32>
    %483 = tpu.reciprocal %482 {approx = true} : vector<16x128xf32> -> vector<16x128xf32>
    %484 = arith.mulf %479, %483 : vector<16x128xf32>
    %485 = arith.maximumf %464, %484 : vector<16x128xf32>
    %486 = vector.broadcast %125 : f32 to vector<16x128xf32>
    %487 = arith.minimumf %175, %486 : vector<16x128xf32>
    %488 = vector.broadcast %119 : f32 to vector<16x128xf32>
    %489 = arith.maximumf %174, %488 : vector<16x128xf32>
    %490 = arith.subf %487, %489 : vector<16x128xf32>
    %cst_117 = arith.constant 0.000000e+00 : f32
    %491 = vector.broadcast %cst_117 : f32 to vector<16x128xf32>
    %492 = arith.maximumf %490, %491 : vector<16x128xf32>
    %493 = vector.broadcast %128 : f32 to vector<16x128xf32>
    %494 = arith.minimumf %177, %493 : vector<16x128xf32>
    %495 = vector.broadcast %122 : f32 to vector<16x128xf32>
    %496 = arith.maximumf %176, %495 : vector<16x128xf32>
    %497 = arith.subf %494, %496 : vector<16x128xf32>
    %cst_118 = arith.constant 0.000000e+00 : f32
    %498 = vector.broadcast %cst_118 : f32 to vector<16x128xf32>
    %499 = arith.maximumf %497, %498 : vector<16x128xf32>
    %500 = arith.mulf %492, %499 : vector<16x128xf32>
    %501 = vector.broadcast %131 : f32 to vector<16x128xf32>
    %502 = arith.addf %337, %501 : vector<16x128xf32>
    %503 = arith.subf %502, %500 : vector<16x128xf32>
    %504 = tpu.reciprocal %503 {approx = true} : vector<16x128xf32> -> vector<16x128xf32>
    %505 = arith.mulf %500, %504 : vector<16x128xf32>
    %506 = arith.maximumf %485, %505 : vector<16x128xf32>
    %cst_119 = arith.constant 1.000000e+00 : f32
    %507 = vector.broadcast %cst_119 : f32 to vector<16x128xf32>
    %508 = arith.subf %507, %161 : vector<16x128xf32>
    %cst_120 = arith.constant 5.000000e-01 : f32
    %509 = vector.broadcast %cst_120 : f32 to vector<16x128xf32>
    %510 = arith.cmpf olt, %506, %509 : vector<16x128xf32>
    %511 = arith.extui %510 : vector<16x128xi1> to vector<16x128xi32>
    %512 = arith.sitofp %511 : vector<16x128xi32> to vector<16x128xf32>
    %513 = arith.mulf %508, %512 : vector<16x128xf32>
    %c0_121 = arith.constant 0 : index
    %c0_122 = arith.constant 0 : index
    %514 = arith.index_cast %133 : i32 to index
    %c0_123 = arith.constant 0 : index
    %515 = vector.load %arg3[%c0_121, %c0_122, %514, %c0_123] : memref<1x5x16x128xbf16, #tpu.memory_space<vmem>>, vector<1x1x16x128xbf16>
    %516 = vector.shape_cast %515 : vector<1x1x16x128xbf16> to vector<16x128xbf16>
    %517 = arith.extf %516 : vector<16x128xbf16> to vector<16x128xf32>
    %518 = math.absf %517 : vector<16x128xf32>
    %cst_124 = arith.constant 0.000000e+00 : f32
    %519 = vector.broadcast %cst_124 : f32 to vector<16x128xf32>
    %520 = arith.subf %519, %518 : vector<16x128xf32>
    %521 = math.exp %520 : vector<16x128xf32>
    %cst_125 = arith.constant 0.000000e+00 : f32
    %522 = vector.broadcast %cst_125 : f32 to vector<16x128xf32>
    %523 = arith.maximumf %517, %522 : vector<16x128xf32>
    %524 = arith.mulf %517, %161 : vector<16x128xf32>
    %525 = arith.subf %523, %524 : vector<16x128xf32>
    %526 = math.log1p %521 : vector<16x128xf32>
    %527 = arith.addf %525, %526 : vector<16x128xf32>
    %cst_126 = arith.constant 1.000000e+00 : f32
    %528 = vector.broadcast %cst_126 : f32 to vector<16x128xf32>
    %529 = arith.addf %528, %521 : vector<16x128xf32>
    %530 = tpu.reciprocal %529 {approx = true} : vector<16x128xf32> -> vector<16x128xf32>
    %cst_127 = arith.constant 0.000000e+00 : f32
    %531 = vector.broadcast %cst_127 : f32 to vector<16x128xf32>
    %532 = arith.cmpf oge, %517, %531 : vector<16x128xf32>
    %533 = arith.mulf %521, %530 : vector<16x128xf32>
    %534 = arith.select %532, %530, %533 : vector<16x128xi1>, vector<16x128xf32>
    %535 = arith.subf %161, %534 : vector<16x128xf32>
    %536 = arith.addf %161, %513 : vector<16x128xf32>
    %537 = arith.mulf %535, %535 : vector<16x128xf32>
    %538 = arith.mulf %527, %537 : vector<16x128xf32>
    %539 = arith.mulf %536, %538 : vector<16x128xf32>
    %540 = arith.mulf %539, %165 : vector<16x128xf32>
    %c0_128 = arith.constant 0 : index
    %c16 = arith.constant 16 : index
    %c0_129 = arith.constant 0 : index
    %541 = vector.load %arg7[%c0_128, %c16, %c0_129] : memref<1x48x128xf32, #tpu.memory_space<vmem>>, vector<1x16x128xf32>
    %542 = vector.shape_cast %541 : vector<1x16x128xf32> to vector<16x128xf32>
    %543 = arith.addf %542, %540 : vector<16x128xf32>
    %c0_130 = arith.constant 0 : index
    %c16_131 = arith.constant 16 : index
    %c0_132 = arith.constant 0 : index
    %544 = vector.load %arg7[%c0_130, %c16_131, %c0_132] : memref<1x48x128xf32, #tpu.memory_space<vmem>>, vector<1x16x128xf32>
    %545 = vector.shape_cast %544 : vector<1x16x128xf32> to vector<16x128xf32>
    %546 = vector.shape_cast %543 : vector<16x128xf32> to vector<1x16x128xf32>
    tpu.vector_store %arg7[%c0_130, %c16_131, %c0_132], %546 {strides = array<i32>} : memref<1x48x128xf32, #tpu.memory_space<vmem>>, vector<1x16x128xf32>,
    %cst_133 = arith.constant 0.000000e+00 : f32
    %547 = vector.broadcast %cst_133 : f32 to vector<16x128xf32>
    %c0_134 = arith.constant 0 : index
    %c1_135 = arith.constant 1 : index
    %548 = arith.index_cast %133 : i32 to index
    %c0_136 = arith.constant 0 : index
    %549 = vector.load %arg3[%c0_134, %c1_135, %548, %c0_136] : memref<1x5x16x128xbf16, #tpu.memory_space<vmem>>, vector<1x1x16x128xbf16>
    %550 = vector.shape_cast %549 : vector<1x1x16x128xbf16> to vector<16x128xbf16>
    %551 = arith.extf %550 : vector<16x128xbf16> to vector<16x128xf32>
    %c0_137 = arith.constant 0 : index
    %c2_138 = arith.constant 2 : index
    %552 = arith.index_cast %133 : i32 to index
    %c0_139 = arith.constant 0 : index
    %553 = vector.load %arg5[%c0_137, %c2_138, %552, %c0_139] : memref<1x6x16x128xbf16, #tpu.memory_space<vmem>>, vector<1x1x16x128xbf16>
    %554 = vector.shape_cast %553 : vector<1x1x16x128xbf16> to vector<16x128xbf16>
    %555 = arith.extf %554 : vector<16x128xbf16> to vector<16x128xf32>
    %cst_140 = arith.constant 0.000000e+00 : f32
    %556 = vector.broadcast %cst_140 : f32 to vector<16x128xf32>
    %557 = arith.maximumf %551, %556 : vector<16x128xf32>
    %558 = arith.mulf %551, %555 : vector<16x128xf32>
    %559 = arith.subf %557, %558 : vector<16x128xf32>
    %560 = math.absf %551 : vector<16x128xf32>
    %cst_141 = arith.constant 0.000000e+00 : f32
    %561 = vector.broadcast %cst_141 : f32 to vector<16x128xf32>
    %562 = arith.subf %561, %560 : vector<16x128xf32>
    %563 = math.exp %562 : vector<16x128xf32>
    %564 = math.log1p %563 : vector<16x128xf32>
    %565 = arith.addf %559, %564 : vector<16x128xf32>
    %566 = arith.addf %547, %565 : vector<16x128xf32>
    %c0_142 = arith.constant 0 : index
    %c2_143 = arith.constant 2 : index
    %567 = arith.index_cast %133 : i32 to index
    %c0_144 = arith.constant 0 : index
    %568 = vector.load %arg3[%c0_142, %c2_143, %567, %c0_144] : memref<1x5x16x128xbf16, #tpu.memory_space<vmem>>, vector<1x1x16x128xbf16>
    %569 = vector.shape_cast %568 : vector<1x1x16x128xbf16> to vector<16x128xbf16>
    %570 = arith.extf %569 : vector<16x128xbf16> to vector<16x128xf32>
    %c0_145 = arith.constant 0 : index
    %c3_146 = arith.constant 3 : index
    %571 = arith.index_cast %133 : i32 to index
    %c0_147 = arith.constant 0 : index
    %572 = vector.load %arg5[%c0_145, %c3_146, %571, %c0_147] : memref<1x6x16x128xbf16, #tpu.memory_space<vmem>>, vector<1x1x16x128xbf16>
    %573 = vector.shape_cast %572 : vector<1x1x16x128xbf16> to vector<16x128xbf16>
    %574 = arith.extf %573 : vector<16x128xbf16> to vector<16x128xf32>
    %cst_148 = arith.constant 0.000000e+00 : f32
    %575 = vector.broadcast %cst_148 : f32 to vector<16x128xf32>
    %576 = arith.maximumf %570, %575 : vector<16x128xf32>
    %577 = arith.mulf %570, %574 : vector<16x128xf32>
    %578 = arith.subf %576, %577 : vector<16x128xf32>
    %579 = math.absf %570 : vector<16x128xf32>
    %cst_149 = arith.constant 0.000000e+00 : f32
    %580 = vector.broadcast %cst_149 : f32 to vector<16x128xf32>
    %581 = arith.subf %580, %579 : vector<16x128xf32>
    %582 = math.exp %581 : vector<16x128xf32>
    %583 = math.log1p %582 : vector<16x128xf32>
    %584 = arith.addf %578, %583 : vector<16x128xf32>
    %585 = arith.addf %566, %584 : vector<16x128xf32>
    %c0_150 = arith.constant 0 : index
    %c3_151 = arith.constant 3 : index
    %586 = arith.index_cast %133 : i32 to index
    %c0_152 = arith.constant 0 : index
    %587 = vector.load %arg3[%c0_150, %c3_151, %586, %c0_152] : memref<1x5x16x128xbf16, #tpu.memory_space<vmem>>, vector<1x1x16x128xbf16>
    %588 = vector.shape_cast %587 : vector<1x1x16x128xbf16> to vector<16x128xbf16>
    %589 = arith.extf %588 : vector<16x128xbf16> to vector<16x128xf32>
    %c0_153 = arith.constant 0 : index
    %c4 = arith.constant 4 : index
    %590 = arith.index_cast %133 : i32 to index
    %c0_154 = arith.constant 0 : index
    %591 = vector.load %arg5[%c0_153, %c4, %590, %c0_154] : memref<1x6x16x128xbf16, #tpu.memory_space<vmem>>, vector<1x1x16x128xbf16>
    %592 = vector.shape_cast %591 : vector<1x1x16x128xbf16> to vector<16x128xbf16>
    %593 = arith.extf %592 : vector<16x128xbf16> to vector<16x128xf32>
    %cst_155 = arith.constant 0.000000e+00 : f32
    %594 = vector.broadcast %cst_155 : f32 to vector<16x128xf32>
    %595 = arith.maximumf %589, %594 : vector<16x128xf32>
    %596 = arith.mulf %589, %593 : vector<16x128xf32>
    %597 = arith.subf %595, %596 : vector<16x128xf32>
    %598 = math.absf %589 : vector<16x128xf32>
    %cst_156 = arith.constant 0.000000e+00 : f32
    %599 = vector.broadcast %cst_156 : f32 to vector<16x128xf32>
    %600 = arith.subf %599, %598 : vector<16x128xf32>
    %601 = math.exp %600 : vector<16x128xf32>
    %602 = math.log1p %601 : vector<16x128xf32>
    %603 = arith.addf %597, %602 : vector<16x128xf32>
    %604 = arith.addf %585, %603 : vector<16x128xf32>
    %c0_157 = arith.constant 0 : index
    %c4_158 = arith.constant 4 : index
    %605 = arith.index_cast %133 : i32 to index
    %c0_159 = arith.constant 0 : index
    %606 = vector.load %arg3[%c0_157, %c4_158, %605, %c0_159] : memref<1x5x16x128xbf16, #tpu.memory_space<vmem>>, vector<1x1x16x128xbf16>
    %607 = vector.shape_cast %606 : vector<1x1x16x128xbf16> to vector<16x128xbf16>
    %608 = arith.extf %607 : vector<16x128xbf16> to vector<16x128xf32>
    %c0_160 = arith.constant 0 : index
    %c5 = arith.constant 5 : index
    %609 = arith.index_cast %133 : i32 to index
    %c0_161 = arith.constant 0 : index
    %610 = vector.load %arg5[%c0_160, %c5, %609, %c0_161] : memref<1x6x16x128xbf16, #tpu.memory_space<vmem>>, vector<1x1x16x128xbf16>
    %611 = vector.shape_cast %610 : vector<1x1x16x128xbf16> to vector<16x128xbf16>
    %612 = arith.extf %611 : vector<16x128xbf16> to vector<16x128xf32>
    %cst_162 = arith.constant 0.000000e+00 : f32
    %613 = vector.broadcast %cst_162 : f32 to vector<16x128xf32>
    %614 = arith.maximumf %608, %613 : vector<16x128xf32>
    %615 = arith.mulf %608, %612 : vector<16x128xf32>
    %616 = arith.subf %614, %615 : vector<16x128xf32>
    %617 = math.absf %608 : vector<16x128xf32>
    %cst_163 = arith.constant 0.000000e+00 : f32
    %618 = vector.broadcast %cst_163 : f32 to vector<16x128xf32>
    %619 = arith.subf %618, %617 : vector<16x128xf32>
    %620 = math.exp %619 : vector<16x128xf32>
    %621 = math.log1p %620 : vector<16x128xf32>
    %622 = arith.addf %616, %621 : vector<16x128xf32>
    %623 = arith.addf %604, %622 : vector<16x128xf32>
    %c0_164 = arith.constant 0 : index
    %c32 = arith.constant 32 : index
    %c0_165 = arith.constant 0 : index
    %624 = vector.load %arg7[%c0_164, %c32, %c0_165] : memref<1x48x128xf32, #tpu.memory_space<vmem>>, vector<1x16x128xf32>
    %625 = vector.shape_cast %624 : vector<1x16x128xf32> to vector<16x128xf32>
    %626 = arith.mulf %321, %623 : vector<16x128xf32>
    %627 = arith.addf %625, %626 : vector<16x128xf32>
    %c0_166 = arith.constant 0 : index
    %c32_167 = arith.constant 32 : index
    %c0_168 = arith.constant 0 : index
    %628 = vector.load %arg7[%c0_166, %c32_167, %c0_168] : memref<1x48x128xf32, #tpu.memory_space<vmem>>, vector<1x16x128xf32>
    %629 = vector.shape_cast %628 : vector<1x16x128xf32> to vector<16x128xf32>
    %630 = vector.shape_cast %627 : vector<16x128xf32> to vector<1x16x128xf32>
    tpu.vector_store %arg7[%c0_166, %c32_167, %c0_168], %630 {strides = array<i32>} : memref<1x48x128xf32, #tpu.memory_space<vmem>>, vector<1x16x128xf32>,
    %c1_i32_169 = arith.constant 1 : i32
    return
  }
  func.func @transform_0(%arg0: i32, %arg1: i32) -> (i32, i32, i32, i32) {
    %c0_i32 = arith.constant 0 : i32
    %c0_i32_0 = arith.constant 0 : i32
    %c0_i32_1 = arith.constant 0 : i32
    return %arg0, %c0_i32, %arg1, %c0_i32_0 : i32, i32, i32, i32
  }
  func.func @transform_1(%arg0: i32, %arg1: i32) -> (i32, i32, i32, i32) {
    %c0_i32 = arith.constant 0 : i32
    %c0_i32_0 = arith.constant 0 : i32
    %c0_i32_1 = arith.constant 0 : i32
    return %arg0, %c0_i32, %arg1, %c0_i32_0 : i32, i32, i32, i32
  }
  func.func @transform_2(%arg0: i32, %arg1: i32) -> (i32, i32, i32, i32) {
    %c0_i32 = arith.constant 0 : i32
    %c0_i32_0 = arith.constant 0 : i32
    %c0_i32_1 = arith.constant 0 : i32
    return %arg0, %c0_i32, %arg1, %c0_i32_0 : i32, i32, i32, i32
  }
  func.func @transform_3(%arg0: i32, %arg1: i32) -> (i32, i32, i32, i32) {
    %c0_i32 = arith.constant 0 : i32
    %c0_i32_0 = arith.constant 0 : i32
    %c0_i32_1 = arith.constant 0 : i32
    return %arg0, %c0_i32, %arg1, %c0_i32_0 : i32, i32, i32, i32
  }
  func.func @transform_4(%arg0: i32, %arg1: i32) -> i32 {
    %c0_i32 = arith.constant 0 : i32
    %c0_i32_0 = arith.constant 0 : i32
    return %c0_i32 : i32
  }
  func.func @transform_5(%arg0: i32, %arg1: i32) -> (i32, i32, i32) {
    %c0_i32 = arith.constant 0 : i32
    %c0_i32_0 = arith.constant 0 : i32
    %c0_i32_1 = arith.constant 0 : i32
    return %arg0, %c0_i32, %c0_i32_0 : i32, i32, i32
  }
}

</mosaic_0001>

<llo_original>
// kernel: tpu_custom_call.1
$region0: #{tpu_custom_call.1}
  #allocation0 [shape = 'u32[]', space=smem, size = 0x4, offset = 0x4, fixed_abs, tag = 'smem constant byte address 0x4 - core index']
  #allocation1 [shape = 'u32[144,128]{1,0:T(1,128)}', space=vmem, size = 0x12000, scoped, tag = 'internal scratch']
  %s0 = inlined_call_operand.hbm [shape: f32[2,4,16,128], index: 0, kind: input, shape index: {}]
  %s1 = inlined_call_operand.hbm [shape: bf16[2,5,16,128], index: 1, kind: input, shape index: {}]
  %s2 = inlined_call_operand.hbm [shape: f32[2,4,16,128], index: 2, kind: input, shape index: {}]
  %s3 = inlined_call_operand.hbm [shape: bf16[2,6,16,128], index: 3, kind: input, shape index: {}]
  %s4 = inlined_call_operand.vmem [shape: f32[80], index: 4, kind: input, shape index: {}]
  %s5 = inlined_call_operand.hbm [shape: f32[2,48,128], index: 5, kind: output, shape index: {}]
  %s6 = sld [smem:[#allocation0]]
  $region77: #{tpu_custom_call.1} parent=0
    _
  %s8 = ssub.s32 1, %s6
  %s9 = scalar_select 0, %s8, %s6
  $region1: #{tpu_custom_call.1} parent=0
    #allocation2 [shape = 'u8[65536]{0}', space=vmem, size = 0x10000, scoped, tag = 'input window, operand 0']
    #allocation3 [shape = 's32[2]{0}', space=sflag, size = 0x8, scoped, tag = 'scoped memory for tpu_custom_call.1']
    #allocation4 [shape = 's32[2]{0}', space=sflag, size = 0x8, scoped, tag = 'scoped memory for tpu_custom_call.1']
    #allocation5 [shape = 's32[2]{0}', space=sflag, size = 0x8, scoped, tag = 'scoped memory for tpu_custom_call.1']
    #allocation6 [shape = 'u8[40960]{0}', space=vmem, size = 0xa000, scoped, tag = 'input window, operand 1']
    #allocation7 [shape = 's32[2]{0}', space=sflag, size = 0x8, scoped, tag = 'scoped memory for tpu_custom_call.1']
    #allocation8 [shape = 'u8[65536]{0}', space=vmem, size = 0x10000, scoped, tag = 'input window, operand 2']
    #allocation9 [shape = 'u8[49152]{0}', space=vmem, size = 0xc000, scoped, tag = 'input window, operand 3']
    #allocation10 [shape = 's32[2]{0}', space=sflag, size = 0x8, scoped, tag = 'scoped memory for tpu_custom_call.1']
    #allocation11 [shape = 'u8[512]{0}', space=smem, size = 0x200, scoped, tag = 'input window, operand 4, single buffered']
    #allocation12 [shape = 'u8[49152]{0}', space=vmem, size = 0xc000, scoped, tag = 'output window, operand 0']
    %10 = vsyncpa [#allocation3], 0
    %s11 = scalar_lea.sflag [#allocation3], 1
    %12 = vsyncpa %s11, 0
    %13 = vsyncpa [#allocation7], 0
    %s14 = scalar_lea.sflag [#allocation7], 1
    %15 = vsyncpa %s14, 0
    %16 = vsyncpa [#allocation10], 0
    %s17 = scalar_lea.sflag [#allocation10], 1
    %18 = vsyncpa %s17, 0
    %19 = vsyncpa [#allocation5], 0
    %20 = vsyncpa [#allocation4], 0
    %s21 = scalar_lea.sflag [#allocation4], 1
    %22 = vsyncpa %s21, 0
    loop: start=0, step=1, limit=4
    $region2: #{tpu_custom_call.1} parent=1 // loop_pre_header
      _
    $region3: #{tpu_custom_call.1} parent=1 // loop_header
      %s24 = sphi 0, %s28
      %p25 = scmp.ge.s32.totalorder %s24, 4
      %s31 = sphi 0, %s43
      %s32 = sphi 0, %s39
      %s33 = sphi 0, %s31
      %s34 = sphi 0, %s32
      %s35 = sphi 0, %s33
      %s36 = sphi 0, %s34
      %s48 = sphi 0, %s50
      %s51 = sphi 0, %s48
      %s52 = sphi 0, %s51
      %s68 = sphi 0, %s52
      %s76 = sphi 0, %s78
      %s79 = sphi 0, %s76
      %s80 = sphi 0, %s79
      %s96 = sphi 0, %s80
      %s104 = sphi 0, %s106
      %s107 = sphi 0, %s104
      %s108 = sphi 0, %s107
      %s124 = sphi 0, %s108
      %s132 = sphi 0, %s134
      %s135 = sphi 0, %s132
      %s136 = sphi 0, %s135
      %s152 = sphi 0, %s136
      %s156 = sphi 0, %s156
      %s158 = sphi 0, %s156
      %s159 = sphi 0, %s158
      %s173 = sphi 0, %s159
      %s179 = sphi 0, %s181
      %s182 = sphi 0, %s179
      %s183 = sphi 0, %s182
      %s199 = sphi 0, %s183
    $region4: #{tpu_custom_call.1} parent=1 // loop_header_branch
      %27 = sbr.rel (%p25) target = $region8
    $region5: #{tpu_custom_call.1} parent=1 // loop_body
      %s29 = ssub.s32 %s24, 1
      %s30 = ssub.s32 %s24, 2
      %s37 = sadd.s32 1, %s32
      %p38 = scmp.ge.s32.totalorder %s37, 1
      %s39 = scalar_select %p38, 0, %s37
      %s40 = sadd.s32 1, %s31
      %s41 = scalar_select %p38, %s40, %s31
      %p42 = scmp.ge.s32.totalorder %s41, 2
      %s43 = scalar_select %p42, 0, %s41
      %s44 = ssub.s32 %s31, %s43
      %s45 = ssub.s32 %s32, %s39
      %s46 = sor.u32 %s44, %s45
      %p47 = scmp.eq.s32.totalorder %s46, 0
      %s49 = sadd.s32 %s48, 1
      %s50 = scalar_select %p47, %s48, %s49
      %p53 = pneg %p47
      %p54 = scmp.eq.s32.totalorder %s24, 1
      %p55 = por %p53, %p54
      %p56 = scmp.ne.s32.totalorder %s48, %s51
      %p57 = scmp.eq.s32.totalorder %s24, 0
      %p58 = por %p56, %p57
      %p59 = scmp.ne.s32.totalorder %s48, %s51
      %p60 = scmp.eq.s32.totalorder %s29, 1
      %p61 = por %p59, %p60
      %p62 = scmp.ne.s32.totalorder %s51, %s52
      %p63 = scmp.eq.s32.totalorder %s29, 0
      %p64 = por %p62, %p63
      %p65 = scmp.ne.s32.totalorder %s51, %s52
      %p66 = scmp.eq.s32.totalorder %s30, 1
      %p67 = por %p65, %p66
      %p69 = scmp.ne.s32.totalorder %s52, %s68
      %p70 = scmp.eq.s32.totalorder %s30, 0
      %p71 = por %p69, %p70
      %s72 = ssub.s32 %s31, %s43
      %s73 = ssub.s32 %s32, %s39
      %s74 = sor.u32 %s72, %s73
      %p75 = scmp.eq.s32.totalorder %s74, 0
      %s77 = sadd.s32 %s76, 1
      %s78 = scalar_select %p75, %s76, %s77
      %p81 = pneg %p75
      %p82 = scmp.eq.s32.totalorder %s24, 1
      %p83 = por %p81, %p82
      %p84 = scmp.ne.s32.totalorder %s76, %s79
      %p85 = scmp.eq.s32.totalorder %s24, 0
      %p86 = por %p84, %p85
      %p87 = scmp.ne.s32.totalorder %s76, %s79
      %p88 = scmp.eq.s32.totalorder %s29, 1
      %p89 = por %p87, %p88
      %p90 = scmp.ne.s32.totalorder %s79, %s80
      %p91 = scmp.eq.s32.totalorder %s29, 0
      %p92 = por %p90, %p91
      %p93 = scmp.ne.s32.totalorder %s79, %s80
      %p94 = scmp.eq.s32.totalorder %s30, 1
      %p95 = por %p93, %p94
      %p97 = scmp.ne.s32.totalorder %s80, %s96
      %p98 = scmp.eq.s32.totalorder %s30, 0
      %p99 = por %p97, %p98
      %s100 = ssub.s32 %s31, %s43
      %s101 = ssub.s32 %s32, %s39
      %s102 = sor.u32 %s100, %s101
      %p103 = scmp.eq.s32.totalorder %s102, 0
      %s105 = sadd.s32 %s104, 1
      %s106 = scalar_select %p103, %s104, %s105
      %p109 = pneg %p103
      %p110 = scmp.eq.s32.totalorder %s24, 1
      %p111 = por %p109, %p110
      %p112 = scmp.ne.s32.totalorder %s104, %s107
      %p113 = scmp.eq.s32.totalorder %s24, 0
      %p114 = por %p112, %p113
      %p115 = scmp.ne.s32.totalorder %s104, %s107
      %p116 = scmp.eq.s32.totalorder %s29, 1
      %p117 = por %p115, %p116
      %p118 = scmp.ne.s32.totalorder %s107, %s108
      %p119 = scmp.eq.s32.totalorder %s29, 0
      %p120 = por %p118, %p119
      %p121 = scmp.ne.s32.totalorder %s107, %s108
      %p122 = scmp.eq.s32.totalorder %s30, 1
      %p123 = por %p121, %p122
      %p125 = scmp.ne.s32.totalorder %s108, %s124
      %p126 = scmp.eq.s32.totalorder %s30, 0
      %p127 = por %p125, %p126
      %s128 = ssub.s32 %s31, %s43
      %s129 = ssub.s32 %s32, %s39
      %s130 = sor.u32 %s128, %s129
      %p131 = scmp.eq.s32.totalorder %s130, 0
      %s133 = sadd.s32 %s132, 1
      %s134 = scalar_select %p131, %s132, %s133
      %p137 = pneg %p131
      %p138 = scmp.eq.s32.totalorder %s24, 1
      %p139 = por %p137, %p138
      %p140 = scmp.ne.s32.totalorder %s132, %s135
      %p141 = scmp.eq.s32.totalorder %s24, 0
      %p142 = por %p140, %p141
      %p143 = scmp.ne.s32.totalorder %s132, %s135
      %p144 = scmp.eq.s32.totalorder %s29, 1
      %p145 = por %p143, %p144
      %p146 = scmp.ne.s32.totalorder %s135, %s136
      %p147 = scmp.eq.s32.totalorder %s29, 0
      %p148 = por %p146, %p147
      %p149 = scmp.ne.s32.totalorder %s135, %s136
      %p150 = scmp.eq.s32.totalorder %s30, 1
      %p151 = por %p149, %p150
      %p153 = scmp.ne.s32.totalorder %s136, %s152
      %p154 = scmp.eq.s32.totalorder %s30, 0
      %p155 = por %p153, %p154
      %s157 = sadd.s32 %s156, 1
      %p160 = scmp.eq.s32.totalorder %s24, 1
      %p161 = scmp.ne.s32.totalorder %s156, %s158
      %p162 = scmp.eq.s32.totalorder %s24, 0
      %p163 = por %p161, %p162
      %p164 = scmp.ne.s32.totalorder %s156, %s158
      %p165 = scmp.eq.s32.totalorder %s29, 1
      %p166 = por %p164, %p165
      %p167 = scmp.ne.s32.totalorder %s158, %s159
      %p168 = scmp.eq.s32.totalorder %s29, 0
      %p169 = por %p167, %p168
      %p170 = scmp.ne.s32.totalorder %s158, %s159
      %p171 = scmp.eq.s32.totalorder %s30, 1
      %p172 = por %p170, %p171
      %p174 = scmp.ne.s32.totalorder %s159, %s173
      %p175 = scmp.eq.s32.totalorder %s30, 0
      %p176 = por %p174, %p175
      %s177 = ssub.s32 %s31, %s43
      %p178 = scmp.eq.s32.totalorder %s177, 0
      %s180 = sadd.s32 %s179, 1
      %s181 = scalar_select %p178, %s179, %s180
      %p184 = pneg %p178
      %p185 = scmp.eq.s32.totalorder %s24, 1
      %p186 = por %p184, %p185
      %p187 = scmp.ne.s32.totalorder %s179, %s182
      %p188 = scmp.eq.s32.totalorder %s24, 0
      %p189 = por %p187, %p188
      %p190 = scmp.ne.s32.totalorder %s179, %s182
      %p191 = scmp.eq.s32.totalorder %s29, 1
      %p192 = por %p190, %p191
      %p193 = scmp.ne.s32.totalorder %s182, %s183
      %p194 = scmp.eq.s32.totalorder %s29, 0
      %p195 = por %p193, %p194
      %p196 = scmp.ne.s32.totalorder %s182, %s183
      %p197 = scmp.eq.s32.totalorder %s30, 1
      %p198 = por %p196, %p197
      %p200 = scmp.ne.s32.totalorder %s183, %s199
      %p201 = scmp.eq.s32.totalorder %s30, 0
      %p202 = por %p200, %p201
      %p203 = scmp.le.s32.totalorder 1, %s24
      %p204 = scmp.lt.s32.totalorder %s24, 3
      %p205 = pnand %p203, %p204
      %p206 = pneg %p205
      // Predicated region
      $region9: #{tpu_custom_call.1} parent=5 // pred_check
        _
      $region10: #{tpu_custom_call.1} parent=5 // pred_check_branch
        %208 = sbr.rel (%p205) target = $region12
      $region11: #{tpu_custom_call.1} parent=5 // pred_region
        %s209 = ssub.s32 %s24, 1
        // Predicated region
        $region13: #{tpu_custom_call.1} parent=11 // pred_check
          %p210 = pneg %p169
        $region14: #{tpu_custom_call.1} parent=11 // pred_check_branch
          %212 = sbr.rel (%p210) target = $region16
        $region15: #{tpu_custom_call.1} parent=11 // pred_region
          %s214 = ssub.s32 16, 16
          %215 = vsyncadd [#allocation5], %s214
          %s217 = sshll.u32 %s4, 4
          %s218 = int_to_ptr.vmem [resolvable:$true] %s217
          %220 = dma.vmem_to_smem %s218, 16, [#allocation11], [#allocation5]
        $region16: #{tpu_custom_call.1} parent=11 // pred_fallthru
          _
      $region12: #{tpu_custom_call.1} parent=5 // pred_fallthru
        _
      %p221 = scmp.lt.s32.totalorder %s24, 2
      // Predicated region
      $region17: #{tpu_custom_call.1} parent=5 // pred_check
        %p222 = pneg %p221
      $region18: #{tpu_custom_call.1} parent=5 // pred_check_branch
        %224 = sbr.rel (%p222) target = $region20
      $region19: #{tpu_custom_call.1} parent=5 // pred_region
        // Predicated region
        $region21: #{tpu_custom_call.1} parent=19 // pred_check
          %p225 = pneg %p58
        $region22: #{tpu_custom_call.1} parent=19 // pred_check_branch
          %227 = sbr.rel (%p225) target = $region24
        $region23: #{tpu_custom_call.1} parent=19 // pred_region
          %s228 = sand.u32 %s48, 1
          %s229 = scalar_lea.sflag [#allocation3], %s228
          %s230 = sand.u32 %s48, 1
          %s231 = smul.addr %s230, 64
          %s232 = scalar_lea.vmem [#allocation2], %s231
          %s233 = smul.u32 2, %s32
          %s235 = ssub.s32 1024, 1024
          %236 = vsyncadd %s229, %s235
          %s237 = smul.addr %s31, 8
          %s238 = sadd.s32 %s233, %s237
          %s239 = smul.addr %s238, 128
          %s240 = scalar_lea.hbm %s0, %s239
          %s241 = sshll.u32 %s232, 4
          %s242 = int_to_ptr.vmem [resolvable:$true] %s241
          %247 = dma.hbm_to_vmem [thread:$0]  %s240, 1024, %s242, %s229, 128, 128, 8
        $region24: #{tpu_custom_call.1} parent=19 // pred_fallthru
          _
        // Predicated region
        $region25: #{tpu_custom_call.1} parent=19 // pred_check
          %p248 = pneg %p86
        $region26: #{tpu_custom_call.1} parent=19 // pred_check_branch
          %250 = sbr.rel (%p248) target = $region28
        $region27: #{tpu_custom_call.1} parent=19 // pred_region
          %s251 = sand.u32 %s24, 1
          %s252 = scalar_lea.sflag [#allocation7], %s251
          %s253 = sand.u32 %s76, 1
          %s254 = smul.addr %s253, 40
          %s255 = scalar_lea.vmem [#allocation6], %s254
          %s256 = smul.u32 2, %s32
          %s258 = ssub.s32 640, 640
          %259 = vsyncadd %s252, %s258
          %s260 = smul.addr %s31, 10
          %s261 = sadd.s32 %s256, %s260
          %s262 = smul.addr %s261, 64
          %s263 = scalar_lea.hbm %s1, %s262
          %s264 = sshll.u32 %s255, 4
          %s265 = int_to_ptr.vmem [resolvable:$true] %s264
          %270 = dma.hbm_to_vmem [thread:$0]  %s263, 640, %s265, %s252, 64, 64, 4
        $region28: #{tpu_custom_call.1} parent=19 // pred_fallthru
          _
        // Predicated region
        $region29: #{tpu_custom_call.1} parent=19 // pred_check
          %p271 = pneg %p114
        $region30: #{tpu_custom_call.1} parent=19 // pred_check_branch
          %273 = sbr.rel (%p271) target = $region32
        $region31: #{tpu_custom_call.1} parent=19 // pred_region
          %s274 = sand.u32 %s24, 1
          %s275 = scalar_lea.sflag [#allocation7], %s274
          %s276 = sand.u32 %s104, 1
          %s277 = smul.addr %s276, 64
          %s278 = scalar_lea.vmem [#allocation8], %s277
          %s279 = smul.u32 2, %s32
          %s281 = ssub.s32 1024, 1024
          %282 = vsyncadd %s275, %s281
          %s283 = smul.addr %s31, 8
          %s284 = sadd.s32 %s279, %s283
          %s285 = smul.addr %s284, 128
          %s286 = scalar_lea.hbm %s2, %s285
          %s287 = sshll.u32 %s278, 4
          %s288 = int_to_ptr.vmem [resolvable:$true] %s287
          %293 = dma.hbm_to_vmem [thread:$0]  %s286, 1024, %s288, %s275, 128, 128, 8
        $region32: #{tpu_custom_call.1} parent=19 // pred_fallthru
          _
        // Predicated region
        $region33: #{tpu_custom_call.1} parent=19 // pred_check
          %p294 = pneg %p142
        $region34: #{tpu_custom_call.1} parent=19 // pred_check_branch
          %296 = sbr.rel (%p294) target = $region36
        $region35: #{tpu_custom_call.1} parent=19 // pred_region
          %s297 = sand.u32 %s132, 1
          %s298 = scalar_lea.sflag [#allocation10], %s297
          %s299 = sand.u32 %s132, 1
          %s300 = smul.addr %s299, 48
          %s301 = scalar_lea.vmem [#allocation9], %s300
          %s302 = smul.u32 2, %s32
          %s304 = ssub.s32 768, 768
          %305 = vsyncadd %s298, %s304
          %s306 = smul.addr %s31, 12
          %s307 = sadd.s32 %s302, %s306
          %s308 = smul.addr %s307, 64
          %s309 = scalar_lea.hbm %s3, %s308
          %s310 = sshll.u32 %s301, 4
          %s311 = int_to_ptr.vmem [resolvable:$true] %s310
          %316 = dma.hbm_to_vmem [thread:$0]  %s309, 768, %s311, %s298, 64, 64, 4
        $region36: #{tpu_custom_call.1} parent=19 // pred_fallthru
          _
      $region20: #{tpu_custom_call.1} parent=5 // pred_fallthru
        _
      %p317 = scmp.le.s32.totalorder 1, %s24
      %p318 = scmp.lt.s32.totalorder %s24, 3
      %p319 = pnand %p317, %p318
      %p320 = pneg %p319
      // Predicated region
      $region37: #{tpu_custom_call.1} parent=5 // pred_check
        _
      $region38: #{tpu_custom_call.1} parent=5 // pred_check_branch
        %322 = sbr.rel (%p319) target = $region40
      $region39: #{tpu_custom_call.1} parent=5 // pred_region
        %s323 = ssub.s32 %s24, 1
        %s324 = sand.u32 %s51, 1
        %s325 = scalar_lea.sflag [#allocation3], %s324
        %s326 = sand.u32 %s51, 1
        %s327 = smul.addr %s326, 64
        %s328 = scalar_lea.vmem [#allocation2], %s327
        // Predicated region
        $region41: #{tpu_custom_call.1} parent=39 // pred_check
          %p329 = pneg %p64
        $region42: #{tpu_custom_call.1} parent=39 // pred_check_branch
          %331 = sbr.rel (%p329) target = $region44
        $region43: #{tpu_custom_call.1} parent=39 // pred_region
          %332 = dma.done %s325, 1024
        $region44: #{tpu_custom_call.1} parent=39 // pred_fallthru
          _
        %s333 = sand.u32 %s29, 1
        %s334 = scalar_lea.sflag [#allocation7], %s333
        %s335 = sand.u32 %s79, 1
        %s336 = smul.addr %s335, 40
        %s337 = scalar_lea.vmem [#allocation6], %s336
        // Predicated region
        $region45: #{tpu_custom_call.1} parent=39 // pred_check
          %p338 = pneg %p92
        $region46: #{tpu_custom_call.1} parent=39 // pred_check_branch
          %340 = sbr.rel (%p338) target = $region48
        $region47: #{tpu_custom_call.1} parent=39 // pred_region
          %341 = dma.done %s334, 640
        $region48: #{tpu_custom_call.1} parent=39 // pred_fallthru
          _
        %s342 = sand.u32 %s29, 1
        %s343 = scalar_lea.sflag [#allocation7], %s342
        %s344 = sand.u32 %s107, 1
        %s345 = smul.addr %s344, 64
        %s346 = scalar_lea.vmem [#allocation8], %s345
        // Predicated region
        $region49: #{tpu_custom_call.1} parent=39 // pred_check
          %p347 = pneg %p120
        $region50: #{tpu_custom_call.1} parent=39 // pred_check_branch
          %349 = sbr.rel (%p347) target = $region52
        $region51: #{tpu_custom_call.1} parent=39 // pred_region
          %350 = dma.done %s343, 1024
        $region52: #{tpu_custom_call.1} parent=39 // pred_fallthru
          _
        %s351 = sand.u32 %s135, 1
        %s352 = scalar_lea.sflag [#allocation10], %s351
        %s353 = sand.u32 %s135, 1
        %s354 = smul.addr %s353, 48
        %s355 = scalar_lea.vmem [#allocation9], %s354
        // Predicated region
        $region53: #{tpu_custom_call.1} parent=39 // pred_check
          %p356 = pneg %p148
        $region54: #{tpu_custom_call.1} parent=39 // pred_check_branch
          %358 = sbr.rel (%p356) target = $region56
        $region55: #{tpu_custom_call.1} parent=39 // pred_region
          %359 = dma.done %s352, 768
        $region56: #{tpu_custom_call.1} parent=39 // pred_fallthru
          _
        // Predicated region
        $region57: #{tpu_custom_call.1} parent=39 // pred_check
          %p360 = pneg %p169
        $region58: #{tpu_custom_call.1} parent=39 // pred_check_branch
          %362 = sbr.rel (%p360) target = $region60
        $region59: #{tpu_custom_call.1} parent=39 // pred_region
          %363 = dma.done [#allocation5], 16
        $region60: #{tpu_custom_call.1} parent=39 // pred_fallthru
          _
        %364 = sfence
        %s365 = sand.u32 %s51, 1
        %s366 = scalar_lea.sflag [#allocation3], %s365
        %s367 = sand.u32 %s51, 1
        %s368 = smul.addr %s367, 64
        %s369 = scalar_lea.vmem [#allocation2], %s368
        %p370 = pneg %p64
        %p371 = pneg %p61
        %s372 = sand.u32 %s29, 1
        %s373 = scalar_lea.sflag [#allocation7], %s372
        %s374 = sand.u32 %s79, 1
        %s375 = smul.addr %s374, 40
        %s376 = scalar_lea.vmem [#allocation6], %s375
        %p377 = pneg %p92
        %p378 = pneg %p89
        %s379 = sand.u32 %s29, 1
        %s380 = scalar_lea.sflag [#allocation7], %s379
        %s381 = sand.u32 %s107, 1
        %s382 = smul.addr %s381, 64
        %s383 = scalar_lea.vmem [#allocation8], %s382
        %p384 = pneg %p120
        %p385 = pneg %p117
        %s386 = sand.u32 %s135, 1
        %s387 = scalar_lea.sflag [#allocation10], %s386
        %s388 = sand.u32 %s135, 1
        %s389 = smul.addr %s388, 48
        %s390 = scalar_lea.vmem [#allocation9], %s389
        %p391 = pneg %p148
        %p392 = pneg %p145
        %p393 = pneg %p169
        %p394 = pneg %p166
        %p395 = pneg %p195
        %p396 = pneg %p192
        %s397 = sand.u32 %s182, 1
        %s398 = scalar_lea.sflag [#allocation4], %s397
        %s399 = sand.u32 %s182, 1
        %s400 = smul.addr %s399, 48
        %s401 = scalar_lea.vmem [#allocation12], %s400
        %s402 = smul.u32 2, %s34
        %s403 = smul.u32 2, %s34
        %s404 = smul.u32 2, %s34
        %s405 = smul.u32 2, %s34
        %p406 = scmp.eq.s32.totalorder %s34, 0
        // Predicated region
        $region61: #{tpu_custom_call.1} parent=39 // pred_check
          %p407 = pneg %p406
        $region62: #{tpu_custom_call.1} parent=39 // pred_check_branch
          %409 = sbr.rel (%p407) target = $region64
        $region63: #{tpu_custom_call.1} parent=39 // pred_region
          %410 = vst [vmem:[%s401] sm:$0xff] 0.0
          %411 = vst [vmem:[%s401 + $0x8] sm:$0xff] 0.0
          %412 = vst [vmem:[%s401 + $0x10] sm:$0xff] 0.0
          %413 = vst [vmem:[%s401 + $0x18] sm:$0xff] 0.0
          %414 = vst [vmem:[%s401 + $0x20] sm:$0xff] 0.0
          %415 = vst [vmem:[%s401 + $0x28] sm:$0xff] 0.0
        $region64: #{tpu_custom_call.1} parent=39 // pred_fallthru
          _
        %s416 = smul.u32 %s33, 40
        %s417 = sld [smem:[#allocation11 + %s416]]
        %s418 = sadd.s32 %s416, 1
        %s419 = sld [smem:[#allocation11 + %s418]]
        %s420 = sadd.s32 %s416, 2
        %s421 = sld [smem:[#allocation11 + %s420]]
        %s422 = sadd.s32 %s416, 3
        %s423 = sld [smem:[#allocation11 + %s422]]
        %s424 = sadd.s32 %s416, 4
        %s425 = sld [smem:[#allocation11 + %s424]]
        %s426 = sadd.s32 %s416, 5
        %s427 = sld [smem:[#allocation11 + %s426]]
        %s428 = sadd.s32 %s416, 6
        %s429 = sld [smem:[#allocation11 + %s428]]
        %s430 = sadd.s32 %s416, 7
        %s431 = sld [smem:[#allocation11 + %s430]]
        %s432 = sadd.s32 %s416, 8
        %s433 = sld [smem:[#allocation11 + %s432]]
        %s434 = sadd.s32 %s416, 9
        %s435 = sld [smem:[#allocation11 + %s434]]
        %s436 = sadd.s32 %s416, 10
        %s437 = sld [smem:[#allocation11 + %s436]]
        %s438 = sadd.s32 %s416, 11
        %s439 = sld [smem:[#allocation11 + %s438]]
        %s440 = sadd.s32 %s416, 12
        %s441 = sld [smem:[#allocation11 + %s440]]
        %s442 = sadd.s32 %s416, 13
        %s443 = sld [smem:[#allocation11 + %s442]]
        %s444 = sadd.s32 %s416, 14
        %s445 = sld [smem:[#allocation11 + %s444]]
        %s446 = sadd.s32 %s416, 15
        %s447 = sld [smem:[#allocation11 + %s446]]
        %s448 = sadd.s32 %s416, 16
        %s449 = sld [smem:[#allocation11 + %s448]]
        %s450 = sadd.s32 %s416, 17
        %s451 = sld [smem:[#allocation11 + %s450]]
        %s452 = sadd.s32 %s416, 18
        %s453 = sld [smem:[#allocation11 + %s452]]
        %s454 = sadd.s32 %s416, 19
        %s455 = sld [smem:[#allocation11 + %s454]]
        %s456 = sadd.s32 %s416, 20
        %s457 = sld [smem:[#allocation11 + %s456]]
        %s458 = sadd.s32 %s416, 21
        %s459 = sld [smem:[#allocation11 + %s458]]
        %s460 = sadd.s32 %s416, 22
        %s461 = sld [smem:[#allocation11 + %s460]]
        %s462 = sadd.s32 %s416, 23
        %s463 = sld [smem:[#allocation11 + %s462]]
        %s464 = sadd.s32 %s416, 24
        %s465 = sld [smem:[#allocation11 + %s464]]
        %s466 = sadd.s32 %s416, 25
        %s467 = sld [smem:[#allocation11 + %s466]]
        %s468 = sadd.s32 %s416, 26
        %s469 = sld [smem:[#allocation11 + %s468]]
        %s470 = sadd.s32 %s416, 27
        %s471 = sld [smem:[#allocation11 + %s470]]
        %s472 = sadd.s32 %s416, 28
        %s473 = sld [smem:[#allocation11 + %s472]]
        %s474 = sadd.s32 %s416, 29
        %s475 = sld [smem:[#allocation11 + %s474]]
        %s476 = sadd.s32 %s416, 30
        %s477 = sld [smem:[#allocation11 + %s476]]
        %s478 = sadd.s32 %s416, 31
        %s479 = sld [smem:[#allocation11 + %s478]]
        %s480 = sadd.s32 %s416, 32
        %s481 = sld [smem:[#allocation11 + %s480]]
        %s482 = sadd.s32 %s416, 33
        %s483 = sld [smem:[#allocation11 + %s482]]
        %s484 = sadd.s32 %s416, 34
        %s485 = sld [smem:[#allocation11 + %s484]]
        %s486 = sadd.s32 %s416, 35
        %s487 = sld [smem:[#allocation11 + %s486]]
        %s488 = sadd.s32 %s416, 36
        %s489 = sld [smem:[#allocation11 + %s488]]
        %s490 = sadd.s32 %s416, 37
        %s491 = sld [smem:[#allocation11 + %s490]]
        %s492 = sadd.s32 %s416, 38
        %s493 = sld [smem:[#allocation11 + %s492]]
        %s494 = sadd.s32 %s416, 39
        %s495 = sld [smem:[#allocation11 + %s494]]
        %v496 = vld [vmem:[%s328] sm:$0xff]
        %v497 = vld [vmem:[%s328 + $0x8] sm:$0xff]
        %s498 = sadd.s32 0, 16
        %s499 = scalar_lea.vmem %s328, %s498 [#allocation2]
        %v500 = vld [vmem:[%s499] sm:$0xff]
        %v501 = vld [vmem:[%s499 + $0x8] sm:$0xff]
        %s502 = sadd.s32 0, 32
        %s503 = scalar_lea.vmem %s328, %s502 [#allocation2]
        %v504 = vld [vmem:[%s503] sm:$0xff]
        %v505 = vld [vmem:[%s503 + $0x8] sm:$0xff]
        %s506 = sadd.s32 0, 48
        %s507 = scalar_lea.vmem %s328, %s506 [#allocation2]
        %v508 = vld [vmem:[%s507] sm:$0xff]
        %v509 = vld [vmem:[%s507 + $0x8] sm:$0xff]
        %v510 = vld [vmem:[%s346] sm:$0xff]
        %v511 = vld [vmem:[%s346 + $0x8] sm:$0xff]
        %s512 = scalar_lea.vmem %s346, %s498 [#allocation8]
        %v513 = vld [vmem:[%s512] sm:$0xff]
        %v514 = vld [vmem:[%s512 + $0x8] sm:$0xff]
        %s515 = scalar_lea.vmem %s346, %s502 [#allocation8]
        %v516 = vld [vmem:[%s515] sm:$0xff]
        %v517 = vld [vmem:[%s515 + $0x8] sm:$0xff]
        %s518 = scalar_lea.vmem %s346, %s506 [#allocation8]
        %v519 = vld [vmem:[%s518] sm:$0xff]
        %v520 = vld [vmem:[%s518 + $0x8] sm:$0xff]
        %v521 = vld [vmem:[%s355] sm:$0xf]
        %v522 = vld [vmem:[%s355 + $0x4] sm:$0xf]
        %v523 = vunpack.c.l.bf16 %v521
        %v524 = vunpack.c.l.bf16 %v522
        %s525 = sadd.s32 0, 2
        %s526 = smul.addr %s525, 4
        %s527 = scalar_lea.vmem %s355, %s526 [#allocation9]
        %v528 = vld [vmem:[%s527] sm:$0xf]
        %v529 = vld [vmem:[%s527 + $0x4] sm:$0xf]
        %v530 = vunpack.c.l.bf16 %v528
        %v531 = vunpack.c.l.bf16 %v529
        %v532 = vmul.f32 %v504, 0.5
        %v533 = vmul.f32 %v505, 0.5
        %v534 = vmul.f32 %v508, 0.5
        %v535 = vmul.f32 %v509, 0.5
        %v536 = vsub.f32 %v496, %v532
        %v537 = vsub.f32 %v497, %v533
        %v538 = vadd.f32 %v496, %v532
        %v539 = vadd.f32 %v497, %v533
        %v540 = vsub.f32 %v500, %v534
        %v541 = vsub.f32 %v501, %v535
        %v542 = vadd.f32 %v500, %v534
        %v543 = vadd.f32 %v501, %v535
        %v544 = vmin.f32 %v536, %v538
        %v545 = vmin.f32 %v537, %v539
        %v546 = vmax.f32 %v536, %v538
        %v547 = vmax.f32 %v537, %v539
        %v548 = vmin.f32 %v540, %v542
        %v549 = vmin.f32 %v541, %v543
        %v550 = vmax.f32 %v540, %v542
        %v551 = vmax.f32 %v541, %v543
        %v552 = vmul.f32 %v516, 0.5
        %v553 = vmul.f32 %v517, 0.5
        %v554 = vmul.f32 %v519, 0.5
        %v555 = vmul.f32 %v520, 0.5
        %v556 = vsub.f32 %v510, %v552
        %v557 = vsub.f32 %v511, %v553
        %v558 = vadd.f32 %v510, %v552
        %v559 = vadd.f32 %v511, %v553
        %v560 = vsub.f32 %v513, %v554
        %v561 = vsub.f32 %v514, %v555
        %v562 = vadd.f32 %v513, %v554
        %v563 = vadd.f32 %v514, %v555
        %v564 = vmin.f32 %v556, %v558
        %v565 = vmin.f32 %v557, %v559
        %v566 = vmax.f32 %v556, %v558
        %v567 = vmax.f32 %v557, %v559
        %v568 = vmin.f32 %v560, %v562
        %v569 = vmin.f32 %v561, %v563
        %v570 = vmax.f32 %v560, %v562
        %v571 = vmax.f32 %v561, %v563
        %v572 = vsub.f32 %v546, %v544
        %v573 = vsub.f32 %v547, %v545
        %v574 = vsub.f32 %v550, %v548
        %v575 = vsub.f32 %v551, %v549
        %v576 = vmul.f32 %v572, %v574
        %v577 = vmul.f32 %v573, %v575
        %v578 = vsub.f32 %v566, %v564
        %v579 = vsub.f32 %v567, %v565
        %v580 = vsub.f32 %v570, %v568
        %v581 = vsub.f32 %v571, %v569
        %v582 = vmul.f32 %v578, %v580
        %v583 = vmul.f32 %v579, %v581
        %v584 = vmin.f32 %v546, %v566
        %v585 = vmin.f32 %v547, %v567
        %v586 = vmax.f32 %v544, %v564
        %v587 = vmax.f32 %v545, %v565
        %v588 = vsub.f32 %v584, %v586
        %v589 = vsub.f32 %v585, %v587
        %v590 = vmax.f32 %v588, 0.0
        %v591 = vmax.f32 %v589, 0.0
        %v592 = vmin.f32 %v550, %v570
        %v593 = vmin.f32 %v551, %v571
        %v594 = vmax.f32 %v548, %v568
        %v595 = vmax.f32 %v549, %v569
        %v596 = vsub.f32 %v592, %v594
        %v597 = vsub.f32 %v593, %v595
        %v598 = vmax.f32 %v596, 0.0
        %v599 = vmax.f32 %v597, 0.0
        %v600 = vmul.f32 %v590, %v598
        %v601 = vmul.f32 %v591, %v599
        %v602 = vadd.f32 %v576, %v582
        %v603 = vadd.f32 %v577, %v583
        %v604 = vsub.f32 %v602, %v600
        %v605 = vsub.f32 %v603, %v601
        %v606 = vadd.f32 %v604, 1e-06
        %v607 = vadd.f32 %v605, 1e-06
        %v608 = vrcp.pop %v606
        %v609 = vrcp.pop %v607
        %v610 = vmul.f32 %v600, %v608
        %v611 = vmul.f32 %v601, %v609
        %v612 = vmax.f32 %v546, %v566
        %v613 = vmax.f32 %v547, %v567
        %v614 = vmin.f32 %v544, %v564
        %v615 = vmin.f32 %v545, %v565
        %v616 = vsub.f32 %v612, %v614
        %v617 = vsub.f32 %v613, %v615
        %v618 = vmax.f32 %v550, %v570
        %v619 = vmax.f32 %v551, %v571
        %v620 = vmin.f32 %v548, %v568
        %v621 = vmin.f32 %v549, %v569
        %v622 = vsub.f32 %v618, %v620
        %v623 = vsub.f32 %v619, %v621
        %v624 = vmul.f32 %v616, %v616
        %v625 = vmul.f32 %v617, %v617
        %v626 = vmul.f32 %v622, %v622
        %v627 = vmul.f32 %v623, %v623
        %v628 = vadd.f32 %v624, %v626
        %v629 = vadd.f32 %v625, %v627
        %v630 = vsub.f32 %v496, %v510
        %v631 = vsub.f32 %v497, %v511
        %v632 = vmul.f32 %v630, %v630
        %v633 = vmul.f32 %v631, %v631
        %v634 = vsub.f32 %v500, %v513
        %v635 = vsub.f32 %v501, %v514
        %v636 = vmul.f32 %v634, %v634
        %v637 = vmul.f32 %v635, %v635
        %v638 = vadd.f32 %v632, %v636
        %v639 = vadd.f32 %v633, %v637
        %v640 = vand.u32 2147483647, %v516
        %v641 = vand.u32 2147483647, %v517
        %v642 = vand.u32 2147483647, %v519
        %v643 = vand.u32 2147483647, %v520
        %v644 = vmax.f32 %v642, 1e-06
        %v645 = vmax.f32 %v643, 1e-06
        %v646 = vmin.f32 %v640, %v644
        %v647 = vmin.f32 %v641, %v645
        %v648 = vmax.f32 %v640, %v644
        %v649 = vmax.f32 %v641, %v645
        %v650 = vmul.f32 %v648, 0.41421357
        %v651 = vmul.f32 %v649, 0.41421357
        %vm652 = vcmp.gt.f32.partialorder %v646, %v650
        %vm653 = vcmp.gt.f32.partialorder %v647, %v651
        %v654 = vsub.f32 %v646, %v648
        %v655 = vsub.f32 %v647, %v649
        %v656 = vsel %vm652, %v654, %v646
        %v657 = vsel %vm653, %v655, %v647
        %v658 = vadd.f32 %v646, %v648
        %v659 = vadd.f32 %v647, %v649
        %v660 = vsel %vm652, %v658, %v648
        %v661 = vsel %vm653, %v659, %v649
        %v662 = vrcp.pop %v660
        %v663 = vrcp.pop %v661
        %v664 = vmul.f32 %v656, %v662
        %v665 = vmul.f32 %v657, %v663
        %v666 = vmul.f32 %v664, %v664
        %v667 = vmul.f32 %v665, %v665
        %v668 = vmul.f32 %v666, 0.080537446
        %v669 = vmul.f32 %v667, 0.080537446
        %v670 = vsub.f32 %v668, 0.13877685
        %v671 = vsub.f32 %v669, 0.13877685
        %v672 = vmul.f32 %v670, %v666
        %v673 = vmul.f32 %v671, %v667
        %v674 = vadd.f32 %v672, 0.19977711
        %v675 = vadd.f32 %v673, 0.19977711
        %v676 = vmul.f32 %v674, %v666
        %v677 = vmul.f32 %v675, %v667
        %v678 = vsub.f32 %v676, 0.3333295
        %v679 = vsub.f32 %v677, 0.3333295
        %v680 = vmul.f32 %v678, %v666
        %v681 = vmul.f32 %v679, %v667
        %v682 = vmul.f32 %v680, %v664
        %v683 = vmul.f32 %v681, %v665
        %v684 = vadd.f32 %v682, %v664
        %v685 = vadd.f32 %v683, %v665
        %v686 = vsel %vm652, 0.7853982, 0.0
        %v687 = vsel %vm653, 0.7853982, 0.0
        %v688 = vadd.f32 %v684, %v686
        %v689 = vadd.f32 %v685, %v687
        %vm690 = vcmp.gt.f32.partialorder %v640, %v644
        %vm691 = vcmp.gt.f32.partialorder %v641, %v645
        %v692 = vsub.f32 1.5707964, %v688
        %v693 = vsub.f32 1.5707964, %v689
        %v694 = vsel %vm690, %v692, %v688
        %v695 = vsel %vm691, %v693, %v689
        %v696 = vand.u32 2147483647, %v504
        %v697 = vand.u32 2147483647, %v505
        %v698 = vand.u32 2147483647, %v508
        %v699 = vand.u32 2147483647, %v509
        %v700 = vmax.f32 %v698, 1e-06
        %v701 = vmax.f32 %v699, 1e-06
        %v702 = vmin.f32 %v696, %v700
        %v703 = vmin.f32 %v697, %v701
        %v704 = vmax.f32 %v696, %v700
        %v705 = vmax.f32 %v697, %v701
        %v706 = vmul.f32 %v704, 0.41421357
        %v707 = vmul.f32 %v705, 0.41421357
        %vm708 = vcmp.gt.f32.partialorder %v702, %v706
        %vm709 = vcmp.gt.f32.partialorder %v703, %v707
        %v710 = vsub.f32 %v702, %v704
        %v711 = vsub.f32 %v703, %v705
        %v712 = vsel %vm708, %v710, %v702
        %v713 = vsel %vm709, %v711, %v703
        %v714 = vadd.f32 %v702, %v704
        %v715 = vadd.f32 %v703, %v705
        %v716 = vsel %vm708, %v714, %v704
        %v717 = vsel %vm709, %v715, %v705
        %v718 = vrcp.pop %v716
        %v719 = vrcp.pop %v717
        %v720 = vmul.f32 %v712, %v718
        %v721 = vmul.f32 %v713, %v719
        %v722 = vmul.f32 %v720, %v720
        %v723 = vmul.f32 %v721, %v721
        %v724 = vmul.f32 %v722, 0.080537446
        %v725 = vmul.f32 %v723, 0.080537446
        %v726 = vsub.f32 %v724, 0.13877685
        %v727 = vsub.f32 %v725, 0.13877685
        %v728 = vmul.f32 %v726, %v722
        %v729 = vmul.f32 %v727, %v723
        %v730 = vadd.f32 %v728, 0.19977711
        %v731 = vadd.f32 %v729, 0.19977711
        %v732 = vmul.f32 %v730, %v722
        %v733 = vmul.f32 %v731, %v723
        %v734 = vsub.f32 %v732, 0.3333295
        %v735 = vsub.f32 %v733, 0.3333295
        %v736 = vmul.f32 %v734, %v722
        %v737 = vmul.f32 %v735, %v723
        %v738 = vmul.f32 %v736, %v720
        %v739 = vmul.f32 %v737, %v721
        %v740 = vadd.f32 %v738, %v720
        %v741 = vadd.f32 %v739, %v721
        %v742 = vsel %vm708, 0.7853982, 0.0
        %v743 = vsel %vm709, 0.7853982, 0.0
        %v744 = vadd.f32 %v740, %v742
        %v745 = vadd.f32 %v741, %v743
        %vm746 = vcmp.gt.f32.partialorder %v696, %v700
        %vm747 = vcmp.gt.f32.partialorder %v697, %v701
        %v748 = vsub.f32 1.5707964, %v744
        %v749 = vsub.f32 1.5707964, %v745
        %v750 = vsel %vm746, %v748, %v744
        %v751 = vsel %vm747, %v749, %v745
        %v752 = vsub.f32 %v694, %v750
        %v753 = vsub.f32 %v695, %v751
        %v754 = vmul.f32 %v752, 0.40528473
        %v755 = vmul.f32 %v753, 0.40528473
        %v756 = vmul.f32 %v754, %v752
        %v757 = vmul.f32 %v755, %v753
        %v758 = vsub.f32 1.0, %v610
        %v759 = vsub.f32 1.0, %v611
        %v760 = vadd.f32 %v758, %v756
        %v761 = vadd.f32 %v759, %v757
        %v762 = vadd.f32 %v760, 1e-06
        %v763 = vadd.f32 %v761, 1e-06
        %v764 = vrcp.pop %v762
        %v765 = vrcp.pop %v763
        %v766 = vmul.f32 %v756, %v764
        %v767 = vmul.f32 %v757, %v765
        %v768 = vadd.f32 %v628, 1e-06
        %v769 = vadd.f32 %v629, 1e-06
        %v770 = vrcp.pop %v768
        %v771 = vrcp.pop %v769
        %v772 = vmul.f32 %v638, %v770
        %v773 = vmul.f32 %v639, %v771
        %v774 = vmul.f32 %v766, %v756
        %v775 = vmul.f32 %v767, %v757
        %v776 = vadd.f32 %v772, %v774
        %v777 = vadd.f32 %v773, %v775
        %v778 = vsub.f32 %v610, %v776
        %v779 = vsub.f32 %v611, %v777
        %v780 = vmul.f32 %v523, %v530
        %v781 = vmul.f32 %v524, %v531
        %v782 = vmul.f32 %v516, %v519
        %v783 = vmul.f32 %v517, %v520
        %v784 = vmul.f32 %v782, 0.00024414063
        %v785 = vmul.f32 %v783, 0.00024414063
        %v786 = vsub.f32 2.0, %v784
        %v787 = vsub.f32 2.0, %v785
        %v788 = vmul.f32 %v780, %v786
        %v789 = vmul.f32 %v781, %v787
        %v790 = vsub.f32 1.0, %v778
        %v791 = vsub.f32 1.0, %v779
        %v792 = vmul.f32 %v788, %v790
        %v793 = vmul.f32 %v789, %v791
        %v794 = vld [vmem:[%s401] sm:$0xff]
        %v795 = vld [vmem:[%s401 + $0x8] sm:$0xff]
        %v796 = vadd.f32 %v794, %v792
        %v797 = vadd.f32 %v795, %v793
        %798 = vst [vmem:[%s401] sm:$0xff] %v796
        %799 = vst [vmem:[%s401 + $0x8] sm:$0xff] %v797
        %v800 = vmul.f32 %v504, %v508
        %v801 = vmul.f32 %v505, %v509
        %v802 = vstv %s421
        %v803 = vmin.f32 %v546, %v802
        %v804 = vmin.f32 %v547, %v802
        %v805 = vstv %s417
        %v806 = vmax.f32 %v544, %v805
        %v807 = vmax.f32 %v545, %v805
        %v808 = vsub.f32 %v803, %v806
        %v809 = vsub.f32 %v804, %v807
        %v810 = vmax.f32 %v808, 0.0
        %v811 = vmax.f32 %v809, 0.0
        %v812 = vstv %s423
        %v813 = vmin.f32 %v550, %v812
        %v814 = vmin.f32 %v551, %v812
        %v815 = vstv %s419
        %v816 = vmax.f32 %v548, %v815
        %v817 = vmax.f32 %v549, %v815
        %v818 = vsub.f32 %v813, %v816
        %v819 = vsub.f32 %v814, %v817
        %v820 = vmax.f32 %v818, 0.0
        %v821 = vmax.f32 %v819, 0.0
        %v822 = vmul.f32 %v810, %v820
        %v823 = vmul.f32 %v811, %v821
        %v824 = vstv %s425
        %v825 = vadd.f32 %v800, %v824
        %v826 = vadd.f32 %v801, %v824
        %v827 = vsub.f32 %v825, %v822
        %v828 = vsub.f32 %v826, %v823
        %v829 = vrcp.pop %v827
        %v830 = vrcp.pop %v828
        %v831 = vmul.f32 %v822, %v829
        %v832 = vmul.f32 %v823, %v830
        %v833 = vmax.f32 %v831, 0.0
        %v834 = vmax.f32 %v832, 0.0
        %v835 = vstv %s431
        %v836 = vmin.f32 %v546, %v835
        %v837 = vmin.f32 %v547, %v835
        %v838 = vstv %s427
        %v839 = vmax.f32 %v544, %v838
        %v840 = vmax.f32 %v545, %v838
        %v841 = vsub.f32 %v836, %v839
        %v842 = vsub.f32 %v837, %v840
        %v843 = vmax.f32 %v841, 0.0
        %v844 = vmax.f32 %v842, 0.0
        %v845 = vstv %s433
        %v846 = vmin.f32 %v550, %v845
        %v847 = vmin.f32 %v551, %v845
        %v848 = vstv %s429
        %v849 = vmax.f32 %v548, %v848
        %v850 = vmax.f32 %v549, %v848
        %v851 = vsub.f32 %v846, %v849
        %v852 = vsub.f32 %v847, %v850
        %v853 = vmax.f32 %v851, 0.0
        %v854 = vmax.f32 %v852, 0.0
        %v855 = vmul.f32 %v843, %v853
        %v856 = vmul.f32 %v844, %v854
        %v857 = vstv %s435
        %v858 = vadd.f32 %v800, %v857
        %v859 = vadd.f32 %v801, %v857
        %v860 = vsub.f32 %v858, %v855
        %v861 = vsub.f32 %v859, %v856
        %v862 = vrcp.pop %v860
        %v863 = vrcp.pop %v861
        %v864 = vmul.f32 %v855, %v862
        %v865 = vmul.f32 %v856, %v863
        %v866 = vmax.f32 %v833, %v864
        %v867 = vmax.f32 %v834, %v865
        %v868 = vstv %s441
        %v869 = vmin.f32 %v546, %v868
        %v870 = vmin.f32 %v547, %v868
        %v871 = vstv %s437
        %v872 = vmax.f32 %v544, %v871
        %v873 = vmax.f32 %v545, %v871
        %v874 = vsub.f32 %v869, %v872
        %v875 = vsub.f32 %v870, %v873
        %v876 = vmax.f32 %v874, 0.0
        %v877 = vmax.f32 %v875, 0.0
        %v878 = vstv %s443
        %v879 = vmin.f32 %v550, %v878
        %v880 = vmin.f32 %v551, %v878
        %v881 = vstv %s439
        %v882 = vmax.f32 %v548, %v881
        %v883 = vmax.f32 %v549, %v881
        %v884 = vsub.f32 %v879, %v882
        %v885 = vsub.f32 %v880, %v883
        %v886 = vmax.f32 %v884, 0.0
        %v887 = vmax.f32 %v885, 0.0
        %v888 = vmul.f32 %v876, %v886
        %v889 = vmul.f32 %v877, %v887
        %v890 = vstv %s445
        %v891 = vadd.f32 %v800, %v890
        %v892 = vadd.f32 %v801, %v890
        %v893 = vsub.f32 %v891, %v888
        %v894 = vsub.f32 %v892, %v889
        %v895 = vrcp.pop %v893
        %v896 = vrcp.pop %v894
        %v897 = vmul.f32 %v888, %v895
        %v898 = vmul.f32 %v889, %v896
        %v899 = vmax.f32 %v866, %v897
        %v900 = vmax.f32 %v867, %v898
        %v901 = vstv %s451
        %v902 = vmin.f32 %v546, %v901
        %v903 = vmin.f32 %v547, %v901
        %v904 = vstv %s447
        %v905 = vmax.f32 %v544, %v904
        %v906 = vmax.f32 %v545, %v904
        %v907 = vsub.f32 %v902, %v905
        %v908 = vsub.f32 %v903, %v906
        %v909 = vmax.f32 %v907, 0.0
        %v910 = vmax.f32 %v908, 0.0
        %v911 = vstv %s453
        %v912 = vmin.f32 %v550, %v911
        %v913 = vmin.f32 %v551, %v911
        %v914 = vstv %s449
        %v915 = vmax.f32 %v548, %v914
        %v916 = vmax.f32 %v549, %v914
        %v917 = vsub.f32 %v912, %v915
        %v918 = vsub.f32 %v913, %v916
        %v919 = vmax.f32 %v917, 0.0
        %v920 = vmax.f32 %v918, 0.0
        %v921 = vmul.f32 %v909, %v919
        %v922 = vmul.f32 %v910, %v920
        %v923 = vstv %s455
        %v924 = vadd.f32 %v800, %v923
        %v925 = vadd.f32 %v801, %v923
        %v926 = vsub.f32 %v924, %v921
        %v927 = vsub.f32 %v925, %v922
        %v928 = vrcp.pop %v926
        %v929 = vrcp.pop %v927
        %v930 = vmul.f32 %v921, %v928
        %v931 = vmul.f32 %v922, %v929
        %v932 = vmax.f32 %v899, %v930
        %v933 = vmax.f32 %v900, %v931
        %v934 = vstv %s461
        %v935 = vmin.f32 %v546, %v934
        %v936 = vmin.f32 %v547, %v934
        %v937 = vstv %s457
        %v938 = vmax.f32 %v544, %v937
        %v939 = vmax.f32 %v545, %v937
        %v940 = vsub.f32 %v935, %v938
        %v941 = vsub.f32 %v936, %v939
        %v942 = vmax.f32 %v940, 0.0
        %v943 = vmax.f32 %v941, 0.0
        %v944 = vstv %s463
        %v945 = vmin.f32 %v550, %v944
        %v946 = vmin.f32 %v551, %v944
        %v947 = vstv %s459
        %v948 = vmax.f32 %v548, %v947
        %v949 = vmax.f32 %v549, %v947
        %v950 = vsub.f32 %v945, %v948
        %v951 = vsub.f32 %v946, %v949
        %v952 = vmax.f32 %v950, 0.0
        %v953 = vmax.f32 %v951, 0.0
        %v954 = vmul.f32 %v942, %v952
        %v955 = vmul.f32 %v943, %v953
        %v956 = vstv %s465
        %v957 = vadd.f32 %v800, %v956
        %v958 = vadd.f32 %v801, %v956
        %v959 = vsub.f32 %v957, %v954
        %v960 = vsub.f32 %v958, %v955
        %v961 = vrcp.pop %v959
        %v962 = vrcp.pop %v960
        %v963 = vmul.f32 %v954, %v961
        %v964 = vmul.f32 %v955, %v962
        %v965 = vmax.f32 %v932, %v963
        %v966 = vmax.f32 %v933, %v964
        %v967 = vstv %s471
        %v968 = vmin.f32 %v546, %v967
        %v969 = vmin.f32 %v547, %v967
        %v970 = vstv %s467
        %v971 = vmax.f32 %v544, %v970
        %v972 = vmax.f32 %v545, %v970
        %v973 = vsub.f32 %v968, %v971
        %v974 = vsub.f32 %v969, %v972
        %v975 = vmax.f32 %v973, 0.0
        %v976 = vmax.f32 %v974, 0.0
        %v977 = vstv %s473
        %v978 = vmin.f32 %v550, %v977
        %v979 = vmin.f32 %v551, %v977
        %v980 = vstv %s469
        %v981 = vmax.f32 %v548, %v980
        %v982 = vmax.f32 %v549, %v980
        %v983 = vsub.f32 %v978, %v981
        %v984 = vsub.f32 %v979, %v982
        %v985 = vmax.f32 %v983, 0.0
        %v986 = vmax.f32 %v984, 0.0
        %v987 = vmul.f32 %v975, %v985
        %v988 = vmul.f32 %v976, %v986
        %v989 = vstv %s475
        %v990 = vadd.f32 %v800, %v989
        %v991 = vadd.f32 %v801, %v989
        %v992 = vsub.f32 %v990, %v987
        %v993 = vsub.f32 %v991, %v988
        %v994 = vrcp.pop %v992
        %v995 = vrcp.pop %v993
        %v996 = vmul.f32 %v987, %v994
        %v997 = vmul.f32 %v988, %v995
        %v998 = vmax.f32 %v965, %v996
        %v999 = vmax.f32 %v966, %v997
        %v1000 = vstv %s481
        %v1001 = vmin.f32 %v546, %v1000
        %v1002 = vmin.f32 %v547, %v1000
        %v1003 = vstv %s477
        %v1004 = vmax.f32 %v544, %v1003
        %v1005 = vmax.f32 %v545, %v1003
        %v1006 = vsub.f32 %v1001, %v1004
        %v1007 = vsub.f32 %v1002, %v1005
        %v1008 = vmax.f32 %v1006, 0.0
        %v1009 = vmax.f32 %v1007, 0.0
        %v1010 = vstv %s483
        %v1011 = vmin.f32 %v550, %v1010
        %v1012 = vmin.f32 %v551, %v1010
        %v1013 = vstv %s479
        %v1014 = vmax.f32 %v548, %v1013
        %v1015 = vmax.f32 %v549, %v1013
        %v1016 = vsub.f32 %v1011, %v1014
        %v1017 = vsub.f32 %v1012, %v1015
        %v1018 = vmax.f32 %v1016, 0.0
        %v1019 = vmax.f32 %v1017, 0.0
        %v1020 = vmul.f32 %v1008, %v1018
        %v1021 = vmul.f32 %v1009, %v1019
        %v1022 = vstv %s485
        %v1023 = vadd.f32 %v800, %v1022
        %v1024 = vadd.f32 %v801, %v1022
        %v1025 = vsub.f32 %v1023, %v1020
        %v1026 = vsub.f32 %v1024, %v1021
        %v1027 = vrcp.pop %v1025
        %v1028 = vrcp.pop %v1026
        %v1029 = vmul.f32 %v1020, %v1027
        %v1030 = vmul.f32 %v1021, %v1028
        %v1031 = vmax.f32 %v998, %v1029
        %v1032 = vmax.f32 %v999, %v1030
        %v1033 = vstv %s491
        %v1034 = vmin.f32 %v546, %v1033
        %v1035 = vmin.f32 %v547, %v1033
        %v1036 = vstv %s487
        %v1037 = vmax.f32 %v544, %v1036
        %v1038 = vmax.f32 %v545, %v1036
        %v1039 = vsub.f32 %v1034, %v1037
        %v1040 = vsub.f32 %v1035, %v1038
        %v1041 = vmax.f32 %v1039, 0.0
        %v1042 = vmax.f32 %v1040, 0.0
        %v1043 = vstv %s493
        %v1044 = vmin.f32 %v550, %v1043
        %v1045 = vmin.f32 %v551, %v1043
        %v1046 = vstv %s489
        %v1047 = vmax.f32 %v548, %v1046
        %v1048 = vmax.f32 %v549, %v1046
        %v1049 = vsub.f32 %v1044, %v1047
        %v1050 = vsub.f32 %v1045, %v1048
        %v1051 = vmax.f32 %v1049, 0.0
        %v1052 = vmax.f32 %v1050, 0.0
        %v1053 = vmul.f32 %v1041, %v1051
        %v1054 = vmul.f32 %v1042, %v1052
        %v1055 = vstv %s495
        %v1056 = vadd.f32 %v800, %v1055
        %v1057 = vadd.f32 %v801, %v1055
        %v1058 = vsub.f32 %v1056, %v1053
        %v1059 = vsub.f32 %v1057, %v1054
        %v1060 = vrcp.pop %v1058
        %v1061 = vrcp.pop %v1059
        %v1062 = vmul.f32 %v1053, %v1060
        %v1063 = vmul.f32 %v1054, %v1061
        %v1064 = vmax.f32 %v1031, %v1062
        %v1065 = vmax.f32 %v1032, %v1063
        %v1066 = vsub.f32 1.0, %v523
        %v1067 = vsub.f32 1.0, %v524
        %vm1068 = vcmp.lt.f32.partialorder %v1064, 0.5
        %vm1069 = vcmp.lt.f32.partialorder %v1065, 0.5
        %v1070 = vsel %vm1068, 1, 0
        %v1071 = vsel %vm1069, 1, 0
        %v1072 = vcvt.s32.f32 %v1070
        %v1073 = vcvt.s32.f32 %v1071
        %v1074 = vmul.f32 %v1066, %v1072
        %v1075 = vmul.f32 %v1067, %v1073
        %v1076 = vld [vmem:[%s337] sm:$0xf]
        %v1077 = vld [vmem:[%s337 + $0x4] sm:$0xf]
        %v1078 = vunpack.c.l.bf16 %v1076
        %v1079 = vunpack.c.l.bf16 %v1077
        %v1080 = vand.u32 2147483647, %v1078
        %v1081 = vand.u32 2147483647, %v1079
        %v1082 = vsub.f32 0.0, %v1080
        %v1083 = vsub.f32 0.0, %v1081
        %v1084 = vmul.f32 %v1082, 1.442695
        %v1085 = vpow.pop %v1084
        %v1086 = vmul.f32 %v1083, 1.442695
        %v1087 = vpow.pop %v1086
        %v1088 = vmax.f32 %v1078, 0.0
        %v1089 = vmax.f32 %v1079, 0.0
        %v1090 = vmul.f32 %v1078, %v523
        %v1091 = vmul.f32 %v1079, %v524
        %v1092 = vsub.f32 %v1088, %v1090
        %v1093 = vsub.f32 %v1089, %v1091
        %v1094 = vadd.f32 %v1085, 1.0
        %v1095 = vlog2.pop %v1094
        %v1096 = vmul.f32 %v1095, 0.6931472
        %v1097 = vmul.f32 -0.5, %v1085
        %v1098 = vadd.f32 %v1097, 1.0
        %v1099 = vmul.f32 %v1098, %v1085
        %v1100 = vand.u32 2147483647, %v1085
        %vm1101 = vcmp.lt.f32.partialorder %v1100, 0.0004427343
        %v1102 = vsel %vm1101, %v1099, %v1096
        %v1103 = vadd.f32 %v1087, 1.0
        %v1104 = vlog2.pop %v1103
        %v1105 = vmul.f32 %v1104, 0.6931472
        %v1106 = vmul.f32 -0.5, %v1087
        %v1107 = vadd.f32 %v1106, 1.0
        %v1108 = vmul.f32 %v1107, %v1087
        %v1109 = vand.u32 2147483647, %v1087
        %vm1110 = vcmp.lt.f32.partialorder %v1109, 0.0004427343
        %v1111 = vsel %vm1110, %v1108, %v1105
        %v1112 = vadd.f32 %v1092, %v1102
        %v1113 = vadd.f32 %v1093, %v1111
        %v1114 = vadd.f32 %v1085, 1.0
        %v1115 = vadd.f32 %v1087, 1.0
        %v1116 = vrcp.pop %v1114
        %v1117 = vrcp.pop %v1115
        %vm1118 = vcmp.ge.f32.partialorder %v1078, 0.0
        %vm1119 = vcmp.ge.f32.partialorder %v1079, 0.0
        %v1120 = vmul.f32 %v1085, %v1116
        %v1121 = vmul.f32 %v1087, %v1117
        %v1122 = vsel %vm1118, %v1116, %v1120
        %v1123 = vsel %vm1119, %v1117, %v1121
        %v1124 = vsub.f32 %v523, %v1122
        %v1125 = vsub.f32 %v524, %v1123
        %v1126 = vadd.f32 %v523, %v1074
        %v1127 = vadd.f32 %v524, %v1075
        %v1128 = vmul.f32 %v1124, %v1124
        %v1129 = vmul.f32 %v1125, %v1125
        %v1130 = vmul.f32 %v1112, %v1128
        %v1131 = vmul.f32 %v1113, %v1129
        %v1132 = vmul.f32 %v1126, %v1130
        %v1133 = vmul.f32 %v1127, %v1131
        %v1134 = vmul.f32 %v1132, %v530
        %v1135 = vmul.f32 %v1133, %v531
        %v1136 = vld [vmem:[%s401 + $0x10] sm:$0xff]
        %v1137 = vld [vmem:[%s401 + $0x18] sm:$0xff]
        %v1138 = vadd.f32 %v1136, %v1134
        %v1139 = vadd.f32 %v1137, %v1135
        %1140 = vst [vmem:[%s401 + $0x10] sm:$0xff] %v1138
        %1141 = vst [vmem:[%s401 + $0x18] sm:$0xff] %v1139
        %s1142 = smul.addr %s525, 4
        %s1143 = scalar_lea.vmem %s337, %s1142 [#allocation6]
        %v1144 = vld [vmem:[%s1143] sm:$0xf]
        %v1145 = vld [vmem:[%s1143 + $0x4] sm:$0xf]
        %v1146 = vunpack.c.l.bf16 %v1144
        %v1147 = vunpack.c.l.bf16 %v1145
        %s1148 = sadd.s32 0, 4
        %s1149 = smul.addr %s1148, 4
        %s1150 = scalar_lea.vmem %s355, %s1149 [#allocation9]
        %v1151 = vld [vmem:[%s1150] sm:$0xf]
        %v1152 = vld [vmem:[%s1150 + $0x4] sm:$0xf]
        %v1153 = vunpack.c.l.bf16 %v1151
        %v1154 = vunpack.c.l.bf16 %v1152
        %v1155 = vmax.f32 %v1146, 0.0
        %v1156 = vmax.f32 %v1147, 0.0
        %v1157 = vmul.f32 %v1146, %v1153
        %v1158 = vmul.f32 %v1147, %v1154
        %v1159 = vsub.f32 %v1155, %v1157
        %v1160 = vsub.f32 %v1156, %v1158
        %v1161 = vand.u32 2147483647, %v1146
        %v1162 = vand.u32 2147483647, %v1147
        %v1163 = vsub.f32 0.0, %v1161
        %v1164 = vsub.f32 0.0, %v1162
        %v1165 = vmul.f32 %v1163, 1.442695
        %v1166 = vpow.pop %v1165
        %v1167 = vmul.f32 %v1164, 1.442695
        %v1168 = vpow.pop %v1167
        %v1169 = vadd.f32 %v1166, 1.0
        %v1170 = vlog2.pop %v1169
        %v1171 = vmul.f32 %v1170, 0.6931472
        %v1172 = vmul.f32 -0.5, %v1166
        %v1173 = vadd.f32 %v1172, 1.0
        %v1174 = vmul.f32 %v1173, %v1166
        %v1175 = vand.u32 2147483647, %v1166
        %vm1176 = vcmp.lt.f32.partialorder %v1175, 0.0004427343
        %v1177 = vsel %vm1176, %v1174, %v1171
        %v1178 = vadd.f32 %v1168, 1.0
        %v1179 = vlog2.pop %v1178
        %v1180 = vmul.f32 %v1179, 0.6931472
        %v1181 = vmul.f32 -0.5, %v1168
        %v1182 = vadd.f32 %v1181, 1.0
        %v1183 = vmul.f32 %v1182, %v1168
        %v1184 = vand.u32 2147483647, %v1168
        %vm1185 = vcmp.lt.f32.partialorder %v1184, 0.0004427343
        %v1186 = vsel %vm1185, %v1183, %v1180
        %v1187 = vadd.f32 %v1159, %v1177
        %v1188 = vadd.f32 %v1160, %v1186
        %v1189 = vadd.f32 %v1187, 0.0
        %v1190 = vadd.f32 %v1188, 0.0
        %s1191 = smul.addr %s1148, 4
        %s1192 = scalar_lea.vmem %s337, %s1191 [#allocation6]
        %v1193 = vld [vmem:[%s1192] sm:$0xf]
        %v1194 = vld [vmem:[%s1192 + $0x4] sm:$0xf]
        %v1195 = vunpack.c.l.bf16 %v1193
        %v1196 = vunpack.c.l.bf16 %v1194
        %s1197 = sadd.s32 0, 6
        %s1198 = smul.addr %s1197, 4
        %s1199 = scalar_lea.vmem %s355, %s1198 [#allocation9]
        %v1200 = vld [vmem:[%s1199] sm:$0xf]
        %v1201 = vld [vmem:[%s1199 + $0x4] sm:$0xf]
        %v1202 = vunpack.c.l.bf16 %v1200
        %v1203 = vunpack.c.l.bf16 %v1201
        %v1204 = vmax.f32 %v1195, 0.0
        %v1205 = vmax.f32 %v1196, 0.0
        %v1206 = vmul.f32 %v1195, %v1202
        %v1207 = vmul.f32 %v1196, %v1203
        %v1208 = vsub.f32 %v1204, %v1206
        %v1209 = vsub.f32 %v1205, %v1207
        %v1210 = vand.u32 2147483647, %v1195
        %v1211 = vand.u32 2147483647, %v1196
        %v1212 = vsub.f32 0.0, %v1210
        %v1213 = vsub.f32 0.0, %v1211
        %v1214 = vmul.f32 %v1212, 1.442695
        %v1215 = vpow.pop %v1214
        %v1216 = vmul.f32 %v1213, 1.442695
        %v1217 = vpow.pop %v1216
        %v1218 = vadd.f32 %v1215, 1.0
        %v1219 = vlog2.pop %v1218
        %v1220 = vmul.f32 %v1219, 0.6931472
        %v1221 = vmul.f32 -0.5, %v1215
        %v1222 = vadd.f32 %v1221, 1.0
        %v1223 = vmul.f32 %v1222, %v1215
        %v1224 = vand.u32 2147483647, %v1215
        %vm1225 = vcmp.lt.f32.partialorder %v1224, 0.0004427343
        %v1226 = vsel %vm1225, %v1223, %v1220
        %v1227 = vadd.f32 %v1217, 1.0
        %v1228 = vlog2.pop %v1227
        %v1229 = vmul.f32 %v1228, 0.6931472
        %v1230 = vmul.f32 -0.5, %v1217
        %v1231 = vadd.f32 %v1230, 1.0
        %v1232 = vmul.f32 %v1231, %v1217
        %v1233 = vand.u32 2147483647, %v1217
        %vm1234 = vcmp.lt.f32.partialorder %v1233, 0.0004427343
        %v1235 = vsel %vm1234, %v1232, %v1229
        %v1236 = vadd.f32 %v1208, %v1226
        %v1237 = vadd.f32 %v1209, %v1235
        %v1238 = vadd.f32 %v1189, %v1236
        %v1239 = vadd.f32 %v1190, %v1237
        %s1240 = smul.addr %s1197, 4
        %s1241 = scalar_lea.vmem %s337, %s1240 [#allocation6]
        %v1242 = vld [vmem:[%s1241] sm:$0xf]
        %v1243 = vld [vmem:[%s1241 + $0x4] sm:$0xf]
        %v1244 = vunpack.c.l.bf16 %v1242
        %v1245 = vunpack.c.l.bf16 %v1243
        %s1246 = sadd.s32 0, 8
        %s1247 = smul.addr %s1246, 4
        %s1248 = scalar_lea.vmem %s355, %s1247 [#allocation9]
        %v1249 = vld [vmem:[%s1248] sm:$0xf]
        %v1250 = vld [vmem:[%s1248 + $0x4] sm:$0xf]
        %v1251 = vunpack.c.l.bf16 %v1249
        %v1252 = vunpack.c.l.bf16 %v1250
        %v1253 = vmax.f32 %v1244, 0.0
        %v1254 = vmax.f32 %v1245, 0.0
        %v1255 = vmul.f32 %v1244, %v1251
        %v1256 = vmul.f32 %v1245, %v1252
        %v1257 = vsub.f32 %v1253, %v1255
        %v1258 = vsub.f32 %v1254, %v1256
        %v1259 = vand.u32 2147483647, %v1244
        %v1260 = vand.u32 2147483647, %v1245
        %v1261 = vsub.f32 0.0, %v1259
        %v1262 = vsub.f32 0.0, %v1260
        %v1263 = vmul.f32 %v1261, 1.442695
        %v1264 = vpow.pop %v1263
        %v1265 = vmul.f32 %v1262, 1.442695
        %v1266 = vpow.pop %v1265
        %v1267 = vadd.f32 %v1264, 1.0
        %v1268 = vlog2.pop %v1267
        %v1269 = vmul.f32 %v1268, 0.6931472
        %v1270 = vmul.f32 -0.5, %v1264
        %v1271 = vadd.f32 %v1270, 1.0
        %v1272 = vmul.f32 %v1271, %v1264
        %v1273 = vand.u32 2147483647, %v1264
        %vm1274 = vcmp.lt.f32.partialorder %v1273, 0.0004427343
        %v1275 = vsel %vm1274, %v1272, %v1269
        %v1276 = vadd.f32 %v1266, 1.0
        %v1277 = vlog2.pop %v1276
        %v1278 = vmul.f32 %v1277, 0.6931472
        %v1279 = vmul.f32 -0.5, %v1266
        %v1280 = vadd.f32 %v1279, 1.0
        %v1281 = vmul.f32 %v1280, %v1266
        %v1282 = vand.u32 2147483647, %v1266
        %vm1283 = vcmp.lt.f32.partialorder %v1282, 0.0004427343
        %v1284 = vsel %vm1283, %v1281, %v1278
        %v1285 = vadd.f32 %v1257, %v1275
        %v1286 = vadd.f32 %v1258, %v1284
        %v1287 = vadd.f32 %v1238, %v1285
        %v1288 = vadd.f32 %v1239, %v1286
        %s1289 = smul.addr %s1246, 4
        %s1290 = scalar_lea.vmem %s337, %s1289 [#allocation6]
        %v1291 = vld [vmem:[%s1290] sm:$0xf]
        %v1292 = vld [vmem:[%s1290 + $0x4] sm:$0xf]
        %v1293 = vunpack.c.l.bf16 %v1291
        %v1294 = vunpack.c.l.bf16 %v1292
        %s1295 = sadd.s32 0, 10
        %s1296 = smul.addr %s1295, 4
        %s1297 = scalar_lea.vmem %s355, %s1296 [#allocation9]
        %v1298 = vld [vmem:[%s1297] sm:$0xf]
        %v1299 = vld [vmem:[%s1297 + $0x4] sm:$0xf]
        %v1300 = vunpack.c.l.bf16 %v1298
        %v1301 = vunpack.c.l.bf16 %v1299
        %v1302 = vmax.f32 %v1293, 0.0
        %v1303 = vmax.f32 %v1294, 0.0
        %v1304 = vmul.f32 %v1293, %v1300
        %v1305 = vmul.f32 %v1294, %v1301
        %v1306 = vsub.f32 %v1302, %v1304
        %v1307 = vsub.f32 %v1303, %v1305
        %v1308 = vand.u32 2147483647, %v1293
        %v1309 = vand.u32 2147483647, %v1294
        %v1310 = vsub.f32 0.0, %v1308
        %v1311 = vsub.f32 0.0, %v1309
        %v1312 = vmul.f32 %v1310, 1.442695
        %v1313 = vpow.pop %v1312
        %v1314 = vmul.f32 %v1311, 1.442695
        %v1315 = vpow.pop %v1314
        %v1316 = vadd.f32 %v1313, 1.0
        %v1317 = vlog2.pop %v1316
        %v1318 = vmul.f32 %v1317, 0.6931472
        %v1319 = vmul.f32 -0.5, %v1313
        %v1320 = vadd.f32 %v1319, 1.0
        %v1321 = vmul.f32 %v1320, %v1313
        %v1322 = vand.u32 2147483647, %v1313
        %vm1323 = vcmp.lt.f32.partialorder %v1322, 0.0004427343
        %v1324 = vsel %vm1323, %v1321, %v1318
        %v1325 = vadd.f32 %v1315, 1.0
        %v1326 = vlog2.pop %v1325
        %v1327 = vmul.f32 %v1326, 0.6931472
        %v1328 = vmul.f32 -0.5, %v1315
        %v1329 = vadd.f32 %v1328, 1.0
        %v1330 = vmul.f32 %v1329, %v1315
        %v1331 = vand.u32 2147483647, %v1315
        %vm1332 = vcmp.lt.f32.partialorder %v1331, 0.0004427343
        %v1333 = vsel %vm1332, %v1330, %v1327
        %v1334 = vadd.f32 %v1306, %v1324
        %v1335 = vadd.f32 %v1307, %v1333
        %v1336 = vadd.f32 %v1287, %v1334
        %v1337 = vadd.f32 %v1288, %v1335
        %v1338 = vld [vmem:[%s401 + $0x20] sm:$0xff]
        %v1339 = vld [vmem:[%s401 + $0x28] sm:$0xff]
        %v1340 = vmul.f32 %v780, %v1336
        %v1341 = vmul.f32 %v781, %v1337
        %v1342 = vadd.f32 %v1338, %v1340
        %v1343 = vadd.f32 %v1339, %v1341
        %1344 = vst [vmem:[%s401 + $0x20] sm:$0xff] %v1342
        %1345 = vst [vmem:[%s401 + $0x28] sm:$0xff] %v1343
        %s1346 = sand.u32 %s182, 1
        %s1347 = scalar_lea.sflag [#allocation4], %s1346
        %s1348 = sand.u32 %s182, 1
        %s1349 = smul.addr %s1348, 48
        %s1350 = scalar_lea.vmem [#allocation12], %s1349
        // Predicated region
        $region65: #{tpu_custom_call.1} parent=39 // pred_check
          %p1351 = pneg %p192
        $region66: #{tpu_custom_call.1} parent=39 // pred_check_branch
          %1353 = sbr.rel (%p1351) target = $region68
        $region67: #{tpu_custom_call.1} parent=39 // pred_region
          %s1355 = ssub.s32 768, 768
          %1356 = vsyncadd %s1347, %s1355
          %s1357 = smul.addr %s33, 6
          %s1358 = smul.addr %s1357, 128
          %s1359 = scalar_lea.hbm %s5, %s1358
          %s1360 = sshll.u32 %s1350, 4
          %s1361 = int_to_ptr.vmem [resolvable:$true] %s1360
          %1366 = dma.vmem_to_hbm [thread:$0]  %s1361, 768, %s1359, %s1347, 128, 128, 8
        $region68: #{tpu_custom_call.1} parent=39 // pred_fallthru
          _
      $region40: #{tpu_custom_call.1} parent=5 // pred_fallthru
        _
      %p1367 = scmp.le.s32.totalorder 2, %s24
      // Predicated region
      $region69: #{tpu_custom_call.1} parent=5 // pred_check
        %p1368 = pneg %p1367
      $region70: #{tpu_custom_call.1} parent=5 // pred_check_branch
        %1370 = sbr.rel (%p1368) target = $region72
      $region71: #{tpu_custom_call.1} parent=5 // pred_region
        %s1371 = ssub.s32 %s24, 2
        // Predicated region
        $region73: #{tpu_custom_call.1} parent=71 // pred_check
          %p1372 = pneg %p198
        $region74: #{tpu_custom_call.1} parent=71 // pred_check_branch
          %1374 = sbr.rel (%p1372) target = $region76
        $region75: #{tpu_custom_call.1} parent=71 // pred_region
          %s1375 = sand.u32 %s183, 1
          %s1376 = scalar_lea.sflag [#allocation4], %s1375
          %s1377 = sand.u32 %s183, 1
          %s1378 = smul.addr %s1377, 48
          %s1379 = scalar_lea.vmem [#allocation12], %s1378
          %1380 = dma.done %s1376, 768
        $region76: #{tpu_custom_call.1} parent=71 // pred_fallthru
          _
      $region72: #{tpu_custom_call.1} parent=5 // pred_fallthru
        _
    $region6: #{tpu_custom_call.1} parent=1 // loop_footer
      %s28 = sadd.s32 1, %s24
    $region7: #{tpu_custom_call.1} parent=1 // loop_footer_branch
      %23 = sbr.rel target = $region3
    $region8: #{tpu_custom_call.1} parent=1 // loop_exit
      _
    %1381 = vsyncpa [#allocation3], 1
    %s1382 = scalar_lea.sflag [#allocation3], 1
    %1383 = vsyncpa %s1382, 1
    %1384 = vsyncpa [#allocation7], 1
    %s1385 = scalar_lea.sflag [#allocation7], 1
    %1386 = vsyncpa %s1385, 1
    %1387 = vsyncpa [#allocation10], 1
    %s1388 = scalar_lea.sflag [#allocation10], 1
    %1389 = vsyncpa %s1388, 1
    %1390 = vsyncpa [#allocation4], 1
    %s1391 = scalar_lea.sflag [#allocation4], 1
    %1392 = vsyncpa %s1391, 1
    %1393 = vsyncpa [#allocation5], 1
    %s1394 = scalar_lea.sflag [#allocation5], 1
    %1395 = vsyncpa %s1394, 1

</llo_original>
